<compile_context>
chip_gen: v5e
topology: v5e:2x2
jax: 0.10.0
libtpu: 0.0.40
codegen_flags: <defaults>
</compile_context>

<pallas_src>
import functools

import jax
import jax.numpy as jnp
from jax import lax
from jax.experimental import pallas as pl
from jax.experimental.pallas import tpu as pltpu


def _round_up(x, m):
    return ((x + m - 1) // m) * m


# ---------------------------------------------------------------------------
# Kernel
# ---------------------------------------------------------------------------
def _baseline_rnn_kernel(x_f_ref, x_b_ref, len_ref,
                         w_if_ref, w_ib_ref, whh_f_ref, whh_b_ref, b_f_ref, b_b_ref,
                         w1_ref, b1_ref, w2_ref, b2_ref, w3_ref, b3_ref,
                         y_ref,
                         xw_f, xw_b, hf_scr, cf_scr, hb_scr, cb_scr,
                         *, chunk_len, n_chunks, t_pad, unroll):
    t_idx = pl.program_id(1)                 # time-chunk index ("arbitrary" axis)
    Tc = chunk_len
    Bt = len_ref.shape[0]                    # batch tile (multiple of 8)
    H4 = whh_f_ref.shape[1]                  # 4 * H_pad (gate slices 128-lane aligned)
    Hp = H4 // 4
    mm_dtype = w_if_ref.dtype

    # ---- carries persist across time chunks in VMEM scratch; init on first chunk.
    @pl.when(t_idx == 0)
    def _():
        hf_scr[...] = jnp.zeros_like(hf_scr)
        cf_scr[...] = jnp.zeros_like(cf_scr)
        hb_scr[...] = jnp.zeros_like(hb_scr)
        cb_scr[...] = jnp.zeros_like(cb_scr)

    # ---- input projection hoisted out of the recurrence, per time chunk, per direction.
    #      x_f is this chunk in forward time order; x_b is the mirrored chunk (index_map
    #      reverses chunk order), read time-reversed inside the loop below.  Bias folded in.
    D = x_f_ref.shape[2]
    x_f = x_f_ref[...].reshape(Tc * Bt, D)
    x_b = x_b_ref[...].reshape(Tc * Bt, D)
    xw_f[...] = (jnp.dot(x_f, w_if_ref[...], preferred_element_type=jnp.float32)
                 + b_f_ref[...]).astype(xw_f.dtype)
    xw_b[...] = (jnp.dot(x_b, w_ib_ref[...], preferred_element_type=jnp.float32)
                 + b_b_ref[...]).astype(xw_b.dtype)

    lens = len_ref[...]                      # (Bt, 1) int32
    whh_f = whh_f_ref[...]                   # (H_pad, 4*H_pad), dense per direction
    whh_b = whh_b_ref[...]
    t_base = t_idx * Tc

    def lstm_step(pre, h, c, whh):
        gates = pre.astype(jnp.float32) + jnp.dot(
            h.astype(mm_dtype), whh, preferred_element_type=jnp.float32)   # (Bt, 4*H_pad)
        # PyTorch gate order i, f, g, o; each slice is H_pad wide (multiple of 128 lanes).
        i_g = jax.nn.sigmoid(gates[:, 0 * Hp:1 * Hp])
        f_g = jax.nn.sigmoid(gates[:, 1 * Hp:2 * Hp])
        g_g = jnp.tanh(gates[:, 2 * Hp:3 * Hp])
        o_g = jax.nn.sigmoid(gates[:, 3 * Hp:4 * Hp])
        c_new = f_g * c + i_g * g_g
        h_new = o_g * jnp.tanh(c_new)
        return h_new, c_new

    def body(j, carry):
        h_f, c_f, h_b, c_b = carry
        row_f = pl.multiple_of(j * Bt, 8)                    # fwd: local time j
        row_b = pl.multiple_of((Tc - 1 - j) * Bt, 8)         # bwd: mirrored local time
        hf_n, cf_n = lstm_step(xw_f[pl.ds(row_f, Bt)], h_f, c_f, whh_f)
        hb_n, cb_n = lstm_step(xw_b[pl.ds(row_b, Bt)], h_b, c_b, whh_b)
        # Packed-sequence masking: fwd sees global time t, bwd sees T_pad-1-t.
        t_f = t_base + j
        t_b = t_pad - 1 - t_f
        m_f = t_f < lens                                     # (Bt, 1)
        m_b = t_b < lens
        h_f = jnp.where(m_f, hf_n, h_f)
        c_f = jnp.where(m_f, cf_n, c_f)
        h_b = jnp.where(m_b, hb_n, h_b)
        c_b = jnp.where(m_b, cb_n, c_b)
        return h_f, c_f, h_b, c_b

    carry0 = (hf_scr[...], cf_scr[...], hb_scr[...], cb_scr[...])
    h_f, c_f, h_b, c_b = lax.fori_loop(0, Tc, body, carry0, unroll=unroll)
    hf_scr[...] = h_f
    cf_scr[...] = c_f
    hb_scr[...] = h_b
    cb_scr[...] = c_b

    # ---- MLP head + lane-dense output store on the last time chunk only.
    @pl.when(t_idx == n_chunks - 1)
    def _():
        feat = jnp.concatenate([hf_scr[...], hb_scr[...]], axis=-1)   # == cat(hx[-2], hx[-1])
        h1 = jnp.maximum(jnp.dot(feat.astype(w1_ref.dtype), w1_ref[...],
                                 preferred_element_type=jnp.float32) + b1_ref[...], 0.0)
        h2 = jnp.maximum(jnp.dot(h1.astype(w2_ref.dtype), w2_ref[...],
                                 preferred_element_type=jnp.float32) + b2_ref[...], 0.0)
        y_ref[...] = (jnp.dot(h2.astype(w3_ref.dtype), w3_ref[...],
                              preferred_element_type=jnp.float32) + b3_ref[...])


# ---------------------------------------------------------------------------
# Parameter handling (PyTorch layout -> kernel layout)
# ---------------------------------------------------------------------------
def init_params(key, input_size, hidden_size, n_labels):
    """PyTorch-layout parameters (nn.LSTM / nn.Linear conventions)."""
    D, H = input_size, hidden_size
    ks = jax.random.split(key, 14)

    def u(k, shape, s):
        return jax.random.uniform(k, shape, jnp.float32, -s, s)

    s_l = H ** -0.5
    return {
        "w_ih_f": u(ks[0], (4 * H, D), s_l), "w_hh_f": u(ks[1], (4 * H, H), s_l),
        "b_ih_f": u(ks[2], (4 * H,), s_l),   "b_hh_f": u(ks[3], (4 * H,), s_l),
        "w_ih_b": u(ks[4], (4 * H, D), s_l), "w_hh_b": u(ks[5], (4 * H, H), s_l),
        "b_ih_b": u(ks[6], (4 * H,), s_l),   "b_hh_b": u(ks[7], (4 * H,), s_l),
        "w_l1": u(ks[8], (512, 2 * H), (2 * H) ** -0.5), "b_l1": u(ks[9], (512,), (2 * H) ** -0.5),
        "w_l2": u(ks[10], (256, 512), 512 ** -0.5),      "b_l2": u(ks[11], (256,), 512 ** -0.5),
        "w_clf": u(ks[12], (n_labels, 256), 256 ** -0.5),
        "b_clf": u(ks[13], (n_labels,), 256 ** -0.5),
    }


def pack_params(params, H_pad, n_pad, mm_dtype):
    """PyTorch layout -> dense per-direction weights with per-gate H -> H_pad zero padding.

    Padded hidden units provably stay 0 (zero input/recurrent columns + zero bias), and the
    corresponding w_l1 rows are zero, so padding never affects the real outputs.
    """
    H = params["w_hh_f"].shape[1]
    n_labels = params["w_clf"].shape[0]

    def gate_pad(w):                    # (rows, 4H) -> (rows, 4*H_pad) per-gate zero pad
        rows = w.shape[0]
        w4 = w.reshape(rows, 4, H)
        return jnp.pad(w4, ((0, 0), (0, 0), (0, H_pad - H))).reshape(rows, 4 * H_pad)

    w_if = gate_pad(params["w_ih_f"].T)                                     # (D, 4*H_pad)
    w_ib = gate_pad(params["w_ih_b"].T)
    w_hf = jnp.pad(gate_pad(params["w_hh_f"].T), ((0, H_pad - H), (0, 0)))  # (H_pad, 4*H_pad)
    w_hb = jnp.pad(gate_pad(params["w_hh_b"].T), ((0, H_pad - H), (0, 0)))
    b_f = gate_pad((params["b_ih_f"] + params["b_hh_f"])[None, :])          # (1, 4*H_pad)
    b_b = gate_pad((params["b_ih_b"] + params["b_hh_b"])[None, :])

    w1 = jnp.zeros((2 * H_pad, 512), jnp.float32)
    w1 = w1.at[:H, :].set(params["w_l1"][:, :H].T)
    w1 = w1.at[H_pad:H_pad + H, :].set(params["w_l1"][:, H:].T)
    b1 = params["b_l1"][None, :]
    w2 = params["w_l2"].T
    b2 = params["b_l2"][None, :]
    w3 = jnp.zeros((256, n_pad), jnp.float32).at[:, :n_labels].set(params["w_clf"].T)
    b3 = jnp.zeros((1, n_pad), jnp.float32).at[:, :n_labels].set(params["b_clf"][None, :])

    cast = lambda w: w.astype(mm_dtype)
    return (cast(w_if), cast(w_ib), cast(w_hf), cast(w_hb),
            b_f.astype(jnp.float32), b_b.astype(jnp.float32),
            cast(w1), b1.astype(jnp.float32),
            cast(w2), b2.astype(jnp.float32),
            cast(w3), b3.astype(jnp.float32))


def _vmem_limit_bytes(Tc, b_tile, D, H_pad, n_pad, mm_itemsize):
    f32 = 4
    x_blk = Tc * b_tile * D * mm_itemsize                    # per-direction x chunk block
    lens_blk = b_tile * 128 * f32
    w_bytes = ((2 * D + 2 * H_pad) * 4 * H_pad + 2 * H_pad * 512
               + 512 * 256 + 256 * n_pad) * mm_itemsize
    b_bytes = (8 * H_pad + 512 + 256 + n_pad + 8 * 128) * f32
    y_blk = b_tile * n_pad * f32
    scratch = 2 * Tc * b_tile * 4 * H_pad * mm_itemsize + 4 * b_tile * H_pad * f32
    total = 2 * (2 * x_blk + lens_blk + w_bytes + b_bytes + y_blk) + scratch  # 2x: double-buffer
    return int(min(max(total * 3 // 2 + (8 << 20), 32 << 20), 100 << 20))


# ---------------------------------------------------------------------------
# Wrapper
# ---------------------------------------------------------------------------
def baseline_rnn_forward(batch_x, batch_x_len, params, *,
                         mm_dtype=jnp.bfloat16,     # bf16 MXU inputs, f32 accumulation
                         time_chunk=64,             # bounds VMEM independent of T
                         b_tile_max=512,            # on v7x, pick so n_bt == 2 (both TCs busy)
                         unroll=1):
    B, T, D = batch_x.shape
    H = params["w_hh_f"].shape[1]
    n_labels = params["w_clf"].shape[0]
    H_pad = _round_up(H, 128)                        # 128-lane-aligned gate slices
    n_pad = _round_up(n_labels, 128)                 # lane-dense output slab

    b_tile = min(_round_up(B, 8), _round_up(b_tile_max, 8))
    B_pad = pl.cdiv(B, b_tile) * b_tile
    n_bt = B_pad // b_tile

    Tc = min(time_chunk, T)
    T_pad = pl.cdiv(T, Tc) * Tc
    n_tc = T_pad // Tc

    (w_if, w_ib, w_hf, w_hb, b_f, b_b,
     w1, b1, w2, b2, w3, b3) = pack_params(params, H_pad, n_pad, mm_dtype)

    # Minimal prologue: pad + one time-major transpose (no flip/concat/reshape chains).
    x = jnp.pad(batch_x.astype(jnp.float32), ((0, B_pad - B), (0, T_pad - T), (0, 0)))
    x = jnp.transpose(x, (1, 0, 2)).astype(mm_dtype)                 # (T_pad, B_pad, D)
    lens = jnp.pad(batch_x_len.astype(jnp.int32), (0, B_pad - B)).reshape(B_pad, 1)

    def _full(arr):
        zeros = (0,) * arr.ndim
        return pl.BlockSpec(arr.shape, lambda i, t: zeros)

    grid_spec = pltpu.PrefetchScalarGridSpec(
        num_scalar_prefetch=0,
        grid=(n_bt, n_tc),
        in_specs=[
            # Forward chunk t and mirrored backward chunk (same array, two index maps).
            pl.BlockSpec((Tc, b_tile, D), lambda i, t: (t, i, 0)),
            pl.BlockSpec((Tc, b_tile, D), lambda i, t: (n_tc - 1 - t, i, 0)),
            pl.BlockSpec((b_tile, 1), lambda i, t: (i, 0)),
            _full(w_if), _full(w_ib), _full(w_hf), _full(w_hb),
            _full(b_f), _full(b_b),
            _full(w1), _full(b1), _full(w2), _full(b2), _full(w3), _full(b3),
        ],
        out_specs=pl.BlockSpec((b_tile, n_pad), lambda i, t: (i, 0)),
        scratch_shapes=[
            pltpu.VMEM((Tc * b_tile, 4 * H_pad), mm_dtype),   # fwd pre-activations (chunk)
            pltpu.VMEM((Tc * b_tile, 4 * H_pad), mm_dtype),   # bwd pre-activations (chunk)
            pltpu.VMEM((b_tile, H_pad), jnp.float32),         # h_fwd carry
            pltpu.VMEM((b_tile, H_pad), jnp.float32),         # c_fwd carry
            pltpu.VMEM((b_tile, H_pad), jnp.float32),         # h_bwd carry
            pltpu.VMEM((b_tile, H_pad), jnp.float32),         # c_bwd carry
        ],
    )

    vmem_limit = _vmem_limit_bytes(Tc, b_tile, D, H_pad, n_pad,
                                   jnp.dtype(mm_dtype).itemsize)

    y = pl.pallas_call(
        functools.partial(_baseline_rnn_kernel,
                          chunk_len=Tc, n_chunks=n_tc, t_pad=T_pad, unroll=unroll),
        out_shape=jax.ShapeDtypeStruct((B_pad, n_pad), jnp.float32),
        grid_spec=grid_spec,
        compiler_params=pltpu.CompilerParams(
            dimension_semantics=("parallel", "arbitrary"),
            vmem_limit_bytes=vmem_limit),
    )(x, x, lens, w_if, w_ib, w_hf, w_hb, b_f, b_b, w1, b1, w2, b2, w3, b3)

    return y[:B, :n_labels]


# ---------------------------------------------------------------------------
# Pure-JAX reference (identical packed-sequence semantics, PyTorch-layout params)
# ---------------------------------------------------------------------------
def baseline_rnn_reference(batch_x, batch_x_len, params):
    B, T, D = batch_x.shape
    H = params["w_hh_f"].shape[1]
    lens = batch_x_len.astype(jnp.int32)
    x = batch_x.astype(jnp.float32)

    def run_dir(w_ih, w_hh, b_ih, b_hh, reverse):
        wih, whh, b = w_ih.T, w_hh.T, (b_ih + b_hh)[None, :]

        def body(i, carry):
            h, c = carry
            t = (T - 1 - i) if reverse else i
            x_t = lax.dynamic_index_in_dim(x, t, axis=1, keepdims=False)
            gates = x_t @ wih + h @ whh + b
            i_g = jax.nn.sigmoid(gates[:, 0 * H:1 * H])
            f_g = jax.nn.sigmoid(gates[:, 1 * H:2 * H])
            g_g = jnp.tanh(gates[:, 2 * H:3 * H])
            o_g = jax.nn.sigmoid(gates[:, 3 * H:4 * H])
            c_new = f_g * c + i_g * g_g
            h_new = o_g * jnp.tanh(c_new)
            mask = (t < lens)[:, None]
            return jnp.where(mask, h_new, h), jnp.where(mask, c_new, c)

        h0 = jnp.zeros((B, H), jnp.float32)
        c0 = jnp.zeros((B, H), jnp.float32)
        h, _ = lax.fori_loop(0, T, body, (h0, c0))
        return h

    h_f = run_dir(params["w_ih_f"], params["w_hh_f"], params["b_ih_f"], params["b_hh_f"], False)
    h_b = run_dir(params["w_ih_b"], params["w_hh_b"], params["b_ih_b"], params["b_hh_b"], True)
    feat = jnp.concatenate([h_f, h_b], axis=1)
    h1 = jax.nn.relu(feat @ params["w_l1"].T + params["b_l1"])
    h2 = jax.nn.relu(h1 @ params["w_l2"].T + params["b_l2"])
    return h2 @ params["w_clf"].T + params["b_clf"]


if __name__ == "__main__":
    B, T, D = 4, 8, 16          # batch, max seq len, input_size
    H = 32                      # hidden_size
    n_labels = 6

    key = jax.random.PRNGKey(0)
    k_x, k_p = jax.random.split(key)
    batch_x = jax.random.normal(k_x, (B, T, D), jnp.float32)
    batch_x_len = jnp.array([8, 5, 3, 6], dtype=jnp.int32)   # unsorted (enforce_sorted=False)

    params = init_params(k_p, D, H, n_labels)
    y_ref = baseline_rnn_reference(batch_x, batch_x_len, params)

    # f32 MXU path: tight check vs the pure-JAX reference.
    y_f32 = jax.block_until_ready(
        baseline_rnn_forward(batch_x, batch_x_len, params, mm_dtype=jnp.float32))
    assert y_f32.shape == (B, n_labels)
    assert jnp.allclose(y_f32, y_ref, rtol=2e-4, atol=2e-4), "f32 kernel mismatch vs reference"

    # Exercise multi-chunk time pipelining (carry persistence across grid steps + T padding).
    y_chunk = jax.block_until_ready(
        baseline_rnn_forward(batch_x, batch_x_len, params,
                             mm_dtype=jnp.float32, time_chunk=3))
    assert jnp.allclose(y_chunk, y_ref, rtol=2e-4, atol=2e-4), "time-chunked kernel mismatch"

    # Default bf16 MXU path (f32 accumulation / gate math) -> looser tolerance.
    # NOTE: bf16 carry re-quantization drift grows with T; re-validate at production lengths.
    y_bf16 = jax.block_until_ready(baseline_rnn_forward(batch_x, batch_x_len, params))
    assert jnp.allclose(y_bf16, y_ref, rtol=1e-1, atol=1e-1), "bf16 kernel mismatch vs reference"

    print("KERNEL_OK")
</pallas_src>

<mosaic_0001>
module attributes {stable_mosaic.version = 11 : i64} {
  func.func @_baseline_rnn_kernel(%arg0: i32, %arg1: i32, %arg2: memref<8x8x16xf32, #tpu.memory_space<vmem>>, %arg3: memref<8x8x16xf32, #tpu.memory_space<vmem>>, %arg4: memref<8x1xi32, #tpu.memory_space<vmem>>, %arg5: memref<16x512xf32, #tpu.memory_space<vmem>>, %arg6: memref<16x512xf32, #tpu.memory_space<vmem>>, %arg7: memref<128x512xf32, #tpu.memory_space<vmem>>, %arg8: memref<128x512xf32, #tpu.memory_space<vmem>>, %arg9: memref<1x512xf32, #tpu.memory_space<vmem>>, %arg10: memref<1x512xf32, #tpu.memory_space<vmem>>, %arg11: memref<256x512xf32, #tpu.memory_space<vmem>>, %arg12: memref<1x512xf32, #tpu.memory_space<vmem>>, %arg13: memref<512x256xf32, #tpu.memory_space<vmem>>, %arg14: memref<1x256xf32, #tpu.memory_space<vmem>>, %arg15: memref<256x128xf32, #tpu.memory_space<vmem>>, %arg16: memref<1x128xf32, #tpu.memory_space<vmem>>, %arg17: memref<8x128xf32, #tpu.memory_space<vmem>>, %arg18: memref<64x512xf32, #tpu.memory_space<vmem>>, %arg19: memref<64x512xf32, #tpu.memory_space<vmem>>, %arg20: memref<8x128xf32, #tpu.memory_space<vmem>>, %arg21: memref<8x128xf32, #tpu.memory_space<vmem>>, %arg22: memref<8x128xf32, #tpu.memory_space<vmem>>, %arg23: memref<8x128xf32, #tpu.memory_space<vmem>>) attributes {dimension_semantics = [#tpu.dimension_semantics<parallel>, #tpu.dimension_semantics<arbitrary>], iteration_bounds = array<i64: 1, 1>, scalar_prefetch = 0 : i64, scratch_operands = 6 : i64, tpu.core_type = #tpu.core_type<tc>, window_params = [{transform_indices = @transform_0, window_bounds = array<i64: 8, 8, 16>}, {transform_indices = @transform_1, window_bounds = array<i64: 8, 8, 16>}, {transform_indices = @transform_2, window_bounds = array<i64: 8, 1>}, {pipeline_mode = #tpu.pipeline_mode<synchronous>, transform_indices = @transform_3, window_bounds = array<i64: 16, 512>}, {pipeline_mode = #tpu.pipeline_mode<synchronous>, transform_indices = @transform_4, window_bounds = array<i64: 16, 512>}, {pipeline_mode = #tpu.pipeline_mode<synchronous>, transform_indices = @transform_5, window_bounds = array<i64: 128, 512>}, {pipeline_mode = #tpu.pipeline_mode<synchronous>, transform_indices = @transform_6, window_bounds = array<i64: 128, 512>}, {pipeline_mode = #tpu.pipeline_mode<synchronous>, transform_indices = @transform_7, window_bounds = array<i64: 1, 512>}, {pipeline_mode = #tpu.pipeline_mode<synchronous>, transform_indices = @transform_8, window_bounds = array<i64: 1, 512>}, {pipeline_mode = #tpu.pipeline_mode<synchronous>, transform_indices = @transform_9, window_bounds = array<i64: 256, 512>}, {pipeline_mode = #tpu.pipeline_mode<synchronous>, transform_indices = @transform_10, window_bounds = array<i64: 1, 512>}, {pipeline_mode = #tpu.pipeline_mode<synchronous>, transform_indices = @transform_11, window_bounds = array<i64: 512, 256>}, {pipeline_mode = #tpu.pipeline_mode<synchronous>, transform_indices = @transform_12, window_bounds = array<i64: 1, 256>}, {pipeline_mode = #tpu.pipeline_mode<synchronous>, transform_indices = @transform_13, window_bounds = array<i64: 256, 128>}, {pipeline_mode = #tpu.pipeline_mode<synchronous>, transform_indices = @transform_14, window_bounds = array<i64: 1, 128>}, {transform_indices = @transform_15, window_bounds = array<i64: 8, 128>}]} {
    %c0_i32 = arith.constant 0 : i32
    %0 = arith.cmpi eq, %arg1, %c0_i32 : i32
    %1 = arith.extui %0 : i1 to i32
    %c0_i32_0 = arith.constant 0 : i32
    %2 = arith.cmpi ne, %1, %c0_i32_0 : i32
    scf.if %2 {
      %cst_46 = arith.constant 0.000000e+00 : f32
      %36 = vector.broadcast %cst_46 : f32 to vector<8x128xf32>
      %c0_47 = arith.constant 0 : index
      %c0_48 = arith.constant 0 : index
      %37 = vector.load %arg20[%c0_47, %c0_48] : memref<8x128xf32, #tpu.memory_space<vmem>>, vector<8x128xf32>
      tpu.vector_store %arg20[%c0_47, %c0_48], %36 {strides = array<i32>} : memref<8x128xf32, #tpu.memory_space<vmem>>, vector<8x128xf32>,
      %cst_49 = arith.constant 0.000000e+00 : f32
      %38 = vector.broadcast %cst_49 : f32 to vector<8x128xf32>
      %c0_50 = arith.constant 0 : index
      %c0_51 = arith.constant 0 : index
      %39 = vector.load %arg21[%c0_50, %c0_51] : memref<8x128xf32, #tpu.memory_space<vmem>>, vector<8x128xf32>
      tpu.vector_store %arg21[%c0_50, %c0_51], %38 {strides = array<i32>} : memref<8x128xf32, #tpu.memory_space<vmem>>, vector<8x128xf32>,
      %cst_52 = arith.constant 0.000000e+00 : f32
      %40 = vector.broadcast %cst_52 : f32 to vector<8x128xf32>
      %c0_53 = arith.constant 0 : index
      %c0_54 = arith.constant 0 : index
      %41 = vector.load %arg22[%c0_53, %c0_54] : memref<8x128xf32, #tpu.memory_space<vmem>>, vector<8x128xf32>
      tpu.vector_store %arg22[%c0_53, %c0_54], %40 {strides = array<i32>} : memref<8x128xf32, #tpu.memory_space<vmem>>, vector<8x128xf32>,
      %cst_55 = arith.constant 0.000000e+00 : f32
      %42 = vector.broadcast %cst_55 : f32 to vector<8x128xf32>
      %c0_56 = arith.constant 0 : index
      %c0_57 = arith.constant 0 : index
      %43 = vector.load %arg23[%c0_56, %c0_57] : memref<8x128xf32, #tpu.memory_space<vmem>>, vector<8x128xf32>
      tpu.vector_store %arg23[%c0_56, %c0_57], %42 {strides = array<i32>} : memref<8x128xf32, #tpu.memory_space<vmem>>, vector<8x128xf32>,
    } else {
    }
    %c0 = arith.constant 0 : index
    %c0_1 = arith.constant 0 : index
    %c0_2 = arith.constant 0 : index
    %3 = vector.load %arg2[%c0, %c0_1, %c0_2] : memref<8x8x16xf32, #tpu.memory_space<vmem>>, vector<8x8x16xf32>
    %4 = vector.shape_cast %3 : vector<8x8x16xf32> to vector<64x16xf32>
    %c0_3 = arith.constant 0 : index
    %c0_4 = arith.constant 0 : index
    %c0_5 = arith.constant 0 : index
    %5 = vector.load %arg3[%c0_3, %c0_4, %c0_5] : memref<8x8x16xf32, #tpu.memory_space<vmem>>, vector<8x8x16xf32>
    %6 = vector.shape_cast %5 : vector<8x8x16xf32> to vector<64x16xf32>
    %c0_6 = arith.constant 0 : index
    %c0_7 = arith.constant 0 : index
    %7 = vector.load %arg5[%c0_6, %c0_7] : memref<16x512xf32, #tpu.memory_space<vmem>>, vector<16x512xf32>
    %cst = arith.constant dense<0.000000e+00> : vector<64x512xf32>
    %8 = tpu.matmul %4, %7, %cst {dimension_numbers = #tpu.dot_dimension_numbers<[1], [0], [0], [1], [0, 0, 1, 1], [], []>} : vector<64x16xf32>, vector<16x512xf32>, vector<64x512xf32> -> vector<64x512xf32>
    %c0_8 = arith.constant 0 : index
    %c0_9 = arith.constant 0 : index
    %9 = vector.load %arg9[%c0_8, %c0_9] : memref<1x512xf32, #tpu.memory_space<vmem>>, vector<1x512xf32>
    %10 = vector.broadcast %9 : vector<1x512xf32> to vector<64x512xf32>
    %11 = arith.addf %8, %10 : vector<64x512xf32>
    %c0_10 = arith.constant 0 : index
    %c0_11 = arith.constant 0 : index
    %12 = vector.load %arg18[%c0_10, %c0_11] : memref<64x512xf32, #tpu.memory_space<vmem>>, vector<64x512xf32>
    tpu.vector_store %arg18[%c0_10, %c0_11], %11 {strides = array<i32>} : memref<64x512xf32, #tpu.memory_space<vmem>>, vector<64x512xf32>,
    %c0_12 = arith.constant 0 : index
    %c0_13 = arith.constant 0 : index
    %13 = vector.load %arg6[%c0_12, %c0_13] : memref<16x512xf32, #tpu.memory_space<vmem>>, vector<16x512xf32>
    %cst_14 = arith.constant dense<0.000000e+00> : vector<64x512xf32>
    %14 = tpu.matmul %6, %13, %cst_14 {dimension_numbers = #tpu.dot_dimension_numbers<[1], [0], [0], [1], [0, 0, 1, 1], [], []>} : vector<64x16xf32>, vector<16x512xf32>, vector<64x512xf32> -> vector<64x512xf32>
    %c0_15 = arith.constant 0 : index
    %c0_16 = arith.constant 0 : index
    %15 = vector.load %arg10[%c0_15, %c0_16] : memref<1x512xf32, #tpu.memory_space<vmem>>, vector<1x512xf32>
    %16 = vector.broadcast %15 : vector<1x512xf32> to vector<64x512xf32>
    %17 = arith.addf %14, %16 : vector<64x512xf32>
    %c0_17 = arith.constant 0 : index
    %c0_18 = arith.constant 0 : index
    %18 = vector.load %arg19[%c0_17, %c0_18] : memref<64x512xf32, #tpu.memory_space<vmem>>, vector<64x512xf32>
    tpu.vector_store %arg19[%c0_17, %c0_18], %17 {strides = array<i32>} : memref<64x512xf32, #tpu.memory_space<vmem>>, vector<64x512xf32>,
    %c0_19 = arith.constant 0 : index
    %c0_20 = arith.constant 0 : index
    %19 = vector.load %arg4[%c0_19, %c0_20] : memref<8x1xi32, #tpu.memory_space<vmem>>, vector<8x1xi32>
    %c0_21 = arith.constant 0 : index
    %c0_22 = arith.constant 0 : index
    %20 = vector.load %arg7[%c0_21, %c0_22] : memref<128x512xf32, #tpu.memory_space<vmem>>, vector<128x512xf32>
    %c0_23 = arith.constant 0 : index
    %c0_24 = arith.constant 0 : index
    %21 = vector.load %arg8[%c0_23, %c0_24] : memref<128x512xf32, #tpu.memory_space<vmem>>, vector<128x512xf32>
    %c8_i32 = arith.constant 8 : i32
    %22 = arith.muli %arg1, %c8_i32 : i32
    %c0_25 = arith.constant 0 : index
    %c0_26 = arith.constant 0 : index
    %23 = vector.load %arg20[%c0_25, %c0_26] : memref<8x128xf32, #tpu.memory_space<vmem>>, vector<8x128xf32>
    %c0_27 = arith.constant 0 : index
    %c0_28 = arith.constant 0 : index
    %24 = vector.load %arg21[%c0_27, %c0_28] : memref<8x128xf32, #tpu.memory_space<vmem>>, vector<8x128xf32>
    %c0_29 = arith.constant 0 : index
    %c0_30 = arith.constant 0 : index
    %25 = vector.load %arg22[%c0_29, %c0_30] : memref<8x128xf32, #tpu.memory_space<vmem>>, vector<8x128xf32>
    %c0_31 = arith.constant 0 : index
    %c0_32 = arith.constant 0 : index
    %26 = vector.load %arg23[%c0_31, %c0_32] : memref<8x128xf32, #tpu.memory_space<vmem>>, vector<8x128xf32>
    %c0_i32_33 = arith.constant 0 : i32
    %c8_i32_34 = arith.constant 8 : i32
    %27 = arith.addi %c0_i32_33, %c8_i32_34 : i32
    %c1_i32 = arith.constant 1 : i32
    %28:4 = scf.for %arg24 = %c0_i32_33 to %27 step %c1_i32 iter_args(%arg25 = %23, %arg26 = %24, %arg27 = %25, %arg28 = %26) -> (vector<8x128xf32>, vector<8x128xf32>, vector<8x128xf32>, vector<8x128xf32>)  : i32 {
      %c8_i32_46 = arith.constant 8 : i32
      %36 = arith.muli %arg24, %c8_i32_46 : i32
      %37 = tpu.assume_multiple %36, 8 : i32
      %c7_i32 = arith.constant 7 : i32
      %38 = arith.subi %c7_i32, %arg24 : i32
      %c8_i32_47 = arith.constant 8 : i32
      %39 = arith.muli %38, %c8_i32_47 : i32
      %40 = tpu.assume_multiple %39, 8 : i32
      %41 = arith.index_cast %37 : i32 to index
      %c0_48 = arith.constant 0 : index
      %42 = vector.load %arg18[%41, %c0_48] : memref<64x512xf32, #tpu.memory_space<vmem>>, vector<8x512xf32>
      %cst_49 = arith.constant dense<0.000000e+00> : vector<8x512xf32>
      %43 = tpu.matmul %arg25, %20, %cst_49 {dimension_numbers = #tpu.dot_dimension_numbers<[1], [0], [0], [1], [0, 0, 1, 1], [], []>} : vector<8x128xf32>, vector<128x512xf32>, vector<8x512xf32> -> vector<8x512xf32>
      %44 = arith.addf %42, %43 : vector<8x512xf32>
      %45 = vector.extract_strided_slice %44 {offsets = [0, 0], sizes = [8, 128], strides = [1, 1]} : vector<8x512xf32> to vector<8x128xf32>
      %46 = arith.negf %45 : vector<8x128xf32>
      %47 = math.exp %46 : vector<8x128xf32>
      %cst_50 = arith.constant 1.000000e+00 : f32
      %48 = vector.broadcast %cst_50 : f32 to vector<8x128xf32>
      %49 = arith.addf %48, %47 : vector<8x128xf32>
      %50 = arith.divf %48, %49 : vector<8x128xf32>
      %51 = vector.extract_strided_slice %44 {offsets = [0, 128], sizes = [8, 128], strides = [1, 1]} : vector<8x512xf32> to vector<8x128xf32>
      %52 = arith.negf %51 : vector<8x128xf32>
      %53 = math.exp %52 : vector<8x128xf32>
      %cst_51 = arith.constant 1.000000e+00 : f32
      %54 = vector.broadcast %cst_51 : f32 to vector<8x128xf32>
      %55 = arith.addf %54, %53 : vector<8x128xf32>
      %56 = arith.divf %54, %55 : vector<8x128xf32>
      %57 = vector.extract_strided_slice %44 {offsets = [0, 256], sizes = [8, 128], strides = [1, 1]} : vector<8x512xf32> to vector<8x128xf32>
      %58 = math.tanh %57 : vector<8x128xf32>
      %59 = vector.extract_strided_slice %44 {offsets = [0, 384], sizes = [8, 128], strides = [1, 1]} : vector<8x512xf32> to vector<8x128xf32>
      %60 = arith.negf %59 : vector<8x128xf32>
      %61 = math.exp %60 : vector<8x128xf32>
      %cst_52 = arith.constant 1.000000e+00 : f32
      %62 = vector.broadcast %cst_52 : f32 to vector<8x128xf32>
      %63 = arith.addf %62, %61 : vector<8x128xf32>
      %64 = arith.divf %62, %63 : vector<8x128xf32>
      %65 = arith.mulf %56, %arg26 : vector<8x128xf32>
      %66 = arith.mulf %50, %58 : vector<8x128xf32>
      %67 = arith.addf %65, %66 : vector<8x128xf32>
      %68 = math.tanh %67 : vector<8x128xf32>
      %69 = arith.mulf %64, %68 : vector<8x128xf32>
      %70 = arith.index_cast %40 : i32 to index
      %c0_53 = arith.constant 0 : index
      %71 = vector.load %arg19[%70, %c0_53] : memref<64x512xf32, #tpu.memory_space<vmem>>, vector<8x512xf32>
      %cst_54 = arith.constant dense<0.000000e+00> : vector<8x512xf32>
      %72 = tpu.matmul %arg27, %21, %cst_54 {dimension_numbers = #tpu.dot_dimension_numbers<[1], [0], [0], [1], [0, 0, 1, 1], [], []>} : vector<8x128xf32>, vector<128x512xf32>, vector<8x512xf32> -> vector<8x512xf32>
      %73 = arith.addf %71, %72 : vector<8x512xf32>
      %74 = vector.extract_strided_slice %73 {offsets = [0, 0], sizes = [8, 128], strides = [1, 1]} : vector<8x512xf32> to vector<8x128xf32>
      %75 = arith.negf %74 : vector<8x128xf32>
      %76 = math.exp %75 : vector<8x128xf32>
      %cst_55 = arith.constant 1.000000e+00 : f32
      %77 = vector.broadcast %cst_55 : f32 to vector<8x128xf32>
      %78 = arith.addf %77, %76 : vector<8x128xf32>
      %79 = arith.divf %77, %78 : vector<8x128xf32>
      %80 = vector.extract_strided_slice %73 {offsets = [0, 128], sizes = [8, 128], strides = [1, 1]} : vector<8x512xf32> to vector<8x128xf32>
      %81 = arith.negf %80 : vector<8x128xf32>
      %82 = math.exp %81 : vector<8x128xf32>
      %cst_56 = arith.constant 1.000000e+00 : f32
      %83 = vector.broadcast %cst_56 : f32 to vector<8x128xf32>
      %84 = arith.addf %83, %82 : vector<8x128xf32>
      %85 = arith.divf %83, %84 : vector<8x128xf32>
      %86 = vector.extract_strided_slice %73 {offsets = [0, 256], sizes = [8, 128], strides = [1, 1]} : vector<8x512xf32> to vector<8x128xf32>
      %87 = math.tanh %86 : vector<8x128xf32>
      %88 = vector.extract_strided_slice %73 {offsets = [0, 384], sizes = [8, 128], strides = [1, 1]} : vector<8x512xf32> to vector<8x128xf32>
      %89 = arith.negf %88 : vector<8x128xf32>
      %90 = math.exp %89 : vector<8x128xf32>
      %cst_57 = arith.constant 1.000000e+00 : f32
      %91 = vector.broadcast %cst_57 : f32 to vector<8x128xf32>
      %92 = arith.addf %91, %90 : vector<8x128xf32>
      %93 = arith.divf %91, %92 : vector<8x128xf32>
      %94 = arith.mulf %85, %arg28 : vector<8x128xf32>
      %95 = arith.mulf %79, %87 : vector<8x128xf32>
      %96 = arith.addf %94, %95 : vector<8x128xf32>
      %97 = math.tanh %96 : vector<8x128xf32>
      %98 = arith.mulf %93, %97 : vector<8x128xf32>
      %99 = arith.addi %22, %arg24 : i32
      %c7_i32_58 = arith.constant 7 : i32
      %100 = arith.subi %c7_i32_58, %99 : i32
      %101 = vector.broadcast %99 : i32 to vector<8x1xi32>
      %102 = arith.cmpi slt, %101, %19 : vector<8x1xi32>
      %103 = vector.broadcast %100 : i32 to vector<8x1xi32>
      %104 = arith.cmpi slt, %103, %19 : vector<8x1xi32>
      %105 = vector.shape_cast %102 : vector<8x1xi1> to vector<8x1xi1>
      %106 = vector.broadcast %105 : vector<8x1xi1> to vector<8x128xi1>
      %107 = arith.select %106, %69, %arg25 : vector<8x128xi1>, vector<8x128xf32>
      %108 = vector.shape_cast %102 : vector<8x1xi1> to vector<8x1xi1>
      %109 = vector.broadcast %108 : vector<8x1xi1> to vector<8x128xi1>
      %110 = arith.select %109, %67, %arg26 : vector<8x128xi1>, vector<8x128xf32>
      %111 = vector.shape_cast %104 : vector<8x1xi1> to vector<8x1xi1>
      %112 = vector.broadcast %111 : vector<8x1xi1> to vector<8x128xi1>
      %113 = arith.select %112, %98, %arg27 : vector<8x128xi1>, vector<8x128xf32>
      %114 = vector.shape_cast %104 : vector<8x1xi1> to vector<8x1xi1>
      %115 = vector.broadcast %114 : vector<8x1xi1> to vector<8x128xi1>
      %116 = arith.select %115, %96, %arg28 : vector<8x128xi1>, vector<8x128xf32>
      scf.yield %107, %110, %113, %116 : vector<8x128xf32>, vector<8x128xf32>, vector<8x128xf32>, vector<8x128xf32>
    }
    %c8_i32_35 = arith.constant 8 : i32
    %c0_36 = arith.constant 0 : index
    %c0_37 = arith.constant 0 : index
    %29 = vector.load %arg20[%c0_36, %c0_37] : memref<8x128xf32, #tpu.memory_space<vmem>>, vector<8x128xf32>
    tpu.vector_store %arg20[%c0_36, %c0_37], %28#0 {strides = array<i32>} : memref<8x128xf32, #tpu.memory_space<vmem>>, vector<8x128xf32>,
    %c0_38 = arith.constant 0 : index
    %c0_39 = arith.constant 0 : index
    %30 = vector.load %arg21[%c0_38, %c0_39] : memref<8x128xf32, #tpu.memory_space<vmem>>, vector<8x128xf32>
    tpu.vector_store %arg21[%c0_38, %c0_39], %28#1 {strides = array<i32>} : memref<8x128xf32, #tpu.memory_space<vmem>>, vector<8x128xf32>,
    %c0_40 = arith.constant 0 : index
    %c0_41 = arith.constant 0 : index
    %31 = vector.load %arg22[%c0_40, %c0_41] : memref<8x128xf32, #tpu.memory_space<vmem>>, vector<8x128xf32>
    tpu.vector_store %arg22[%c0_40, %c0_41], %28#2 {strides = array<i32>} : memref<8x128xf32, #tpu.memory_space<vmem>>, vector<8x128xf32>,
    %c0_42 = arith.constant 0 : index
    %c0_43 = arith.constant 0 : index
    %32 = vector.load %arg23[%c0_42, %c0_43] : memref<8x128xf32, #tpu.memory_space<vmem>>, vector<8x128xf32>
    tpu.vector_store %arg23[%c0_42, %c0_43], %28#3 {strides = array<i32>} : memref<8x128xf32, #tpu.memory_space<vmem>>, vector<8x128xf32>,
    %c0_i32_44 = arith.constant 0 : i32
    %33 = arith.cmpi eq, %arg1, %c0_i32_44 : i32
    %34 = arith.extui %33 : i1 to i32
    %c0_i32_45 = arith.constant 0 : i32
    %35 = arith.cmpi ne, %34, %c0_i32_45 : i32
    scf.if %35 {
      %c0_46 = arith.constant 0 : index
      %c0_47 = arith.constant 0 : index
      %36 = vector.load %arg20[%c0_46, %c0_47] : memref<8x128xf32, #tpu.memory_space<vmem>>, vector<8x128xf32>
      %c0_48 = arith.constant 0 : index
      %c0_49 = arith.constant 0 : index
      %37 = vector.load %arg22[%c0_48, %c0_49] : memref<8x128xf32, #tpu.memory_space<vmem>>, vector<8x128xf32>
      %38 = tpu.concatenate %36, %37 in 1 : vector<8x128xf32>, vector<8x128xf32> -> vector<8x256xf32>
      %c0_50 = arith.constant 0 : index
      %c0_51 = arith.constant 0 : index
      %39 = vector.load %arg11[%c0_50, %c0_51] : memref<256x512xf32, #tpu.memory_space<vmem>>, vector<256x512xf32>
      %cst_52 = arith.constant dense<0.000000e+00> : vector<8x512xf32>
      %40 = tpu.matmul %38, %39, %cst_52 {dimension_numbers = #tpu.dot_dimension_numbers<[1], [0], [0], [1], [0, 0, 1, 1], [], []>} : vector<8x256xf32>, vector<256x512xf32>, vector<8x512xf32> -> vector<8x512xf32>
      %c0_53 = arith.constant 0 : index
      %c0_54 = arith.constant 0 : index
      %41 = vector.load %arg12[%c0_53, %c0_54] : memref<1x512xf32, #tpu.memory_space<vmem>>, vector<1x512xf32>
      %42 = vector.broadcast %41 : vector<1x512xf32> to vector<8x512xf32>
      %43 = arith.addf %40, %42 : vector<8x512xf32>
      %cst_55 = arith.constant 0.000000e+00 : f32
      %44 = vector.broadcast %cst_55 : f32 to vector<8x512xf32>
      %45 = arith.maximumf %43, %44 : vector<8x512xf32>
      %c0_56 = arith.constant 0 : index
      %c0_57 = arith.constant 0 : index
      %46 = vector.load %arg13[%c0_56, %c0_57] : memref<512x256xf32, #tpu.memory_space<vmem>>, vector<512x256xf32>
      %cst_58 = arith.constant dense<0.000000e+00> : vector<8x256xf32>
      %47 = tpu.matmul %45, %46, %cst_58 {dimension_numbers = #tpu.dot_dimension_numbers<[1], [0], [0], [1], [0, 0, 1, 1], [], []>} : vector<8x512xf32>, vector<512x256xf32>, vector<8x256xf32> -> vector<8x256xf32>
      %c0_59 = arith.constant 0 : index
      %c0_60 = arith.constant 0 : index
      %48 = vector.load %arg14[%c0_59, %c0_60] : memref<1x256xf32, #tpu.memory_space<vmem>>, vector<1x256xf32>
      %49 = vector.broadcast %48 : vector<1x256xf32> to vector<8x256xf32>
      %50 = arith.addf %47, %49 : vector<8x256xf32>
      %cst_61 = arith.constant 0.000000e+00 : f32
      %51 = vector.broadcast %cst_61 : f32 to vector<8x256xf32>
      %52 = arith.maximumf %50, %51 : vector<8x256xf32>
      %c0_62 = arith.constant 0 : index
      %c0_63 = arith.constant 0 : index
      %53 = vector.load %arg15[%c0_62, %c0_63] : memref<256x128xf32, #tpu.memory_space<vmem>>, vector<256x128xf32>
      %cst_64 = arith.constant dense<0.000000e+00> : vector<8x128xf32>
      %54 = tpu.matmul %52, %53, %cst_64 {dimension_numbers = #tpu.dot_dimension_numbers<[1], [0], [0], [1], [0, 0, 1, 1], [], []>} : vector<8x256xf32>, vector<256x128xf32>, vector<8x128xf32> -> vector<8x128xf32>
      %c0_65 = arith.constant 0 : index
      %c0_66 = arith.constant 0 : index
      %55 = vector.load %arg16[%c0_65, %c0_66] : memref<1x128xf32, #tpu.memory_space<vmem>>, vector<1x128xf32>
      %56 = vector.broadcast %55 : vector<1x128xf32> to vector<8x128xf32>
      %57 = arith.addf %54, %56 : vector<8x128xf32>
      %c0_67 = arith.constant 0 : index
      %c0_68 = arith.constant 0 : index
      %58 = vector.load %arg17[%c0_67, %c0_68] : memref<8x128xf32, #tpu.memory_space<vmem>>, vector<8x128xf32>
      tpu.vector_store %arg17[%c0_67, %c0_68], %57 {strides = array<i32>} : memref<8x128xf32, #tpu.memory_space<vmem>>, vector<8x128xf32>,
    } else {
    }
    return
  }
  func.func @transform_0(%arg0: i32, %arg1: i32) -> (i32, i32, i32) {
    %c0_i32 = arith.constant 0 : i32
    %c0_i32_0 = arith.constant 0 : i32
    return %arg1, %arg0, %c0_i32 : i32, i32, i32
  }
  func.func @transform_1(%arg0: i32, %arg1: i32) -> (i32, i32, i32) {
    %c0_i32 = arith.constant 0 : i32
    %0 = arith.subi %c0_i32, %arg1 : i32
    %c0_i32_0 = arith.constant 0 : i32
    %c0_i32_1 = arith.constant 0 : i32
    return %0, %arg0, %c0_i32_0 : i32, i32, i32
  }
  func.func @transform_2(%arg0: i32, %arg1: i32) -> (i32, i32) {
    %c0_i32 = arith.constant 0 : i32
    %c0_i32_0 = arith.constant 0 : i32
    return %arg0, %c0_i32 : i32, i32
  }
  func.func @transform_3(%arg0: i32, %arg1: i32) -> (i32, i32) {
    %c0_i32 = arith.constant 0 : i32
    %c0_i32_0 = arith.constant 0 : i32
    %c0_i32_1 = arith.constant 0 : i32
    return %c0_i32, %c0_i32_0 : i32, i32
  }
  func.func @transform_4(%arg0: i32, %arg1: i32) -> (i32, i32) {
    %c0_i32 = arith.constant 0 : i32
    %c0_i32_0 = arith.constant 0 : i32
    %c0_i32_1 = arith.constant 0 : i32
    return %c0_i32, %c0_i32_0 : i32, i32
  }
  func.func @transform_5(%arg0: i32, %arg1: i32) -> (i32, i32) {
    %c0_i32 = arith.constant 0 : i32
    %c0_i32_0 = arith.constant 0 : i32
    %c0_i32_1 = arith.constant 0 : i32
    return %c0_i32, %c0_i32_0 : i32, i32
  }
  func.func @transform_6(%arg0: i32, %arg1: i32) -> (i32, i32) {
    %c0_i32 = arith.constant 0 : i32
    %c0_i32_0 = arith.constant 0 : i32
    %c0_i32_1 = arith.constant 0 : i32
    return %c0_i32, %c0_i32_0 : i32, i32
  }
  func.func @transform_7(%arg0: i32, %arg1: i32) -> (i32, i32) {
    %c0_i32 = arith.constant 0 : i32
    %c0_i32_0 = arith.constant 0 : i32
    %c0_i32_1 = arith.constant 0 : i32
    return %c0_i32, %c0_i32_0 : i32, i32
  }
  func.func @transform_8(%arg0: i32, %arg1: i32) -> (i32, i32) {
    %c0_i32 = arith.constant 0 : i32
    %c0_i32_0 = arith.constant 0 : i32
    %c0_i32_1 = arith.constant 0 : i32
    return %c0_i32, %c0_i32_0 : i32, i32
  }
  func.func @transform_9(%arg0: i32, %arg1: i32) -> (i32, i32) {
    %c0_i32 = arith.constant 0 : i32
    %c0_i32_0 = arith.constant 0 : i32
    %c0_i32_1 = arith.constant 0 : i32
    return %c0_i32, %c0_i32_0 : i32, i32
  }
  func.func @transform_10(%arg0: i32, %arg1: i32) -> (i32, i32) {
    %c0_i32 = arith.constant 0 : i32
    %c0_i32_0 = arith.constant 0 : i32
    %c0_i32_1 = arith.constant 0 : i32
    return %c0_i32, %c0_i32_0 : i32, i32
  }
  func.func @transform_11(%arg0: i32, %arg1: i32) -> (i32, i32) {
    %c0_i32 = arith.constant 0 : i32
    %c0_i32_0 = arith.constant 0 : i32
    %c0_i32_1 = arith.constant 0 : i32
    return %c0_i32, %c0_i32_0 : i32, i32
  }
  func.func @transform_12(%arg0: i32, %arg1: i32) -> (i32, i32) {
    %c0_i32 = arith.constant 0 : i32
    %c0_i32_0 = arith.constant 0 : i32
    %c0_i32_1 = arith.constant 0 : i32
    return %c0_i32, %c0_i32_0 : i32, i32
  }
  func.func @transform_13(%arg0: i32, %arg1: i32) -> (i32, i32) {
    %c0_i32 = arith.constant 0 : i32
    %c0_i32_0 = arith.constant 0 : i32
    %c0_i32_1 = arith.constant 0 : i32
    return %c0_i32, %c0_i32_0 : i32, i32
  }
  func.func @transform_14(%arg0: i32, %arg1: i32) -> (i32, i32) {
    %c0_i32 = arith.constant 0 : i32
    %c0_i32_0 = arith.constant 0 : i32
    %c0_i32_1 = arith.constant 0 : i32
    return %c0_i32, %c0_i32_0 : i32, i32
  }
  func.func @transform_15(%arg0: i32, %arg1: i32) -> (i32, i32) {
    %c0_i32 = arith.constant 0 : i32
    %c0_i32_0 = arith.constant 0 : i32
    return %arg0, %c0_i32 : i32, i32
  }
}

</mosaic_0001>

<llo_original>
// kernel: tpu_custom_call.1
$region0: #{tpu_custom_call.1}
  #allocation0 [shape = 'u32[]', space=smem, size = 0x4, offset = 0x4, fixed_abs, tag = 'smem constant byte address 0x4 - core index']
  #allocation1 [shape = 'u32[72,128]{1,0:T(1,128)}', space=vmem, size = 0x9000, scoped, tag = 'internal scratch']
  #allocation2 [shape = 'f32[64,512]{1,0:T(8,128)}', space=vmem, size = 0x20000, scoped, tag = 'scratch operand']
  #allocation3 [shape = 'f32[64,512]{1,0:T(8,128)}', space=vmem, size = 0x20000, scoped, tag = 'scratch operand']
  #allocation4 [shape = 'f32[8,128]{1,0:T(8,128)}', space=vmem, size = 0x1000, scoped, tag = 'scratch operand']
  #allocation5 [shape = 'f32[8,128]{1,0:T(8,128)}', space=vmem, size = 0x1000, scoped, tag = 'scratch operand']
  #allocation6 [shape = 'f32[8,128]{1,0:T(8,128)}', space=vmem, size = 0x1000, scoped, tag = 'scratch operand']
  #allocation7 [shape = 'f32[8,128]{1,0:T(8,128)}', space=vmem, size = 0x1000, scoped, tag = 'scratch operand']
  %s0 = inlined_call_operand.hbm [shape: f32[8,8,16], index: 0, kind: input, shape index: {}]
  %s1 = inlined_call_operand.hbm [shape: f32[8,8,16], index: 1, kind: input, shape index: {}]
  %s2 = inlined_call_operand.vmem [shape: s32[8,1], index: 2, kind: input, shape index: {}]
  %s3 = inlined_call_operand.hbm [shape: f32[16,512], index: 3, kind: input, shape index: {}]
  %s4 = inlined_call_operand.hbm [shape: f32[16,512], index: 4, kind: input, shape index: {}]
  %s5 = inlined_call_operand.hbm [shape: f32[128,512], index: 5, kind: input, shape index: {}]
  %s6 = inlined_call_operand.hbm [shape: f32[128,512], index: 6, kind: input, shape index: {}]
  %s7 = inlined_call_operand.vmem [shape: f32[1,512], index: 7, kind: input, shape index: {}]
  %s8 = inlined_call_operand.vmem [shape: f32[1,512], index: 8, kind: input, shape index: {}]
  %s9 = inlined_call_operand.hbm [shape: f32[256,512], index: 9, kind: input, shape index: {}]
  %s10 = inlined_call_operand.vmem [shape: f32[1,512], index: 10, kind: input, shape index: {}]
  %s11 = inlined_call_operand.hbm [shape: f32[512,256], index: 11, kind: input, shape index: {}]
  %s12 = inlined_call_operand.vmem [shape: f32[1,256], index: 12, kind: input, shape index: {}]
  %s13 = inlined_call_operand.hbm [shape: f32[256,128], index: 13, kind: input, shape index: {}]
  %s14 = inlined_call_operand.vmem [shape: f32[1,128], index: 14, kind: input, shape index: {}]
  %s15 = inlined_call_operand.hbm [shape: f32[8,128], index: 15, kind: output, shape index: {}]
  %s16 = sld [smem:[#allocation0]]
  $region121: #{tpu_custom_call.1} parent=0
    _
  %s18 = ssub.s32 1, %s16
  %s19 = scalar_select 0, %s18, %s16
  $region1: #{tpu_custom_call.1} parent=0
    #allocation8 [shape = 'u8[32768]{0}', space=vmem, size = 0x8000, scoped, tag = 'input window, operand 0, single buffered']
    #allocation9 [shape = 's32[1]{0}', space=sflag, size = 0x4, scoped, tag = 'scoped memory for tpu_custom_call.1']
    #allocation10 [shape = 's32[1]{0}', space=sflag, size = 0x4, scoped, tag = 'scoped memory for tpu_custom_call.1']
    #allocation11 [shape = 'u8[32768]{0}', space=vmem, size = 0x8000, scoped, tag = 'input window, operand 1, single buffered']
    #allocation12 [shape = 's32[1]{0}', space=sflag, size = 0x4, scoped, tag = 'scoped memory for tpu_custom_call.1']
    #allocation13 [shape = 'u8[32768]{0}', space=vmem, size = 0x8000, scoped, tag = 'input window, operand 3, single buffered']
    #allocation14 [shape = 'u8[32768]{0}', space=vmem, size = 0x8000, scoped, tag = 'input window, operand 4, single buffered']
    #allocation15 [shape = 's32[1]{0}', space=sflag, size = 0x4, scoped, tag = 'scoped memory for tpu_custom_call.1']
    #allocation16 [shape = 'u8[262144]{0}', space=vmem, size = 0x40000, scoped, tag = 'input window, operand 5, single buffered']
    #allocation17 [shape = 'u8[262144]{0}', space=vmem, size = 0x40000, scoped, tag = 'input window, operand 6, single buffered']
    #allocation18 [shape = 's32[1]{0}', space=sflag, size = 0x4, scoped, tag = 'scoped memory for tpu_custom_call.1']
    #allocation19 [shape = 'u8[524288]{0}', space=vmem, size = 0x80000, scoped, tag = 'input window, operand 9, single buffered']
    #allocation20 [shape = 'u8[524288]{0}', space=vmem, size = 0x80000, scoped, tag = 'input window, operand 11, single buffered']
    #allocation21 [shape = 's32[1]{0}', space=sflag, size = 0x4, scoped, tag = 'scoped memory for tpu_custom_call.1']
    #allocation22 [shape = 'u8[131072]{0}', space=vmem, size = 0x20000, scoped, tag = 'input window, operand 13, single buffered']
    #allocation23 [shape = 'u8[4096]{0}', space=vmem, size = 0x1000, scoped, tag = 'output window, operand 0, single buffered']
    %20 = vsyncpa [#allocation9], 0
    %21 = vsyncpa [#allocation12], 0
    %22 = vsyncpa [#allocation15], 0
    %23 = vsyncpa [#allocation18], 0
    %24 = vsyncpa [#allocation21], 0
    %25 = vsyncpa [#allocation10], 0
    // Predicated region
    $region2: #{tpu_custom_call.1} parent=1 // pred_check
      _
    $region3: #{tpu_custom_call.1} parent=1 // pred_check_branch
      %27 = sbr.rel (0) target = $region5
    $region4: #{tpu_custom_call.1} parent=1 // pred_region
      %29 = vsyncadd [#allocation9], 0
      %s30 = sshll.u32 %s0, 4
      %s31 = int_to_ptr.hbm [resolvable:$true] %s30
      %s32 = sshll.u32 [#allocation8], 4
      %s33 = int_to_ptr.vmem [resolvable:$true] %s32
      %38 = dma.hbm_to_vmem [thread:$0]  %s31, 1024, %s33, [#allocation9], 128, 128, 8
    $region5: #{tpu_custom_call.1} parent=1 // pred_fallthru
      _
    // Predicated region
    $region6: #{tpu_custom_call.1} parent=1 // pred_check
      _
    $region7: #{tpu_custom_call.1} parent=1 // pred_check_branch
      %40 = sbr.rel (0) target = $region9
    $region8: #{tpu_custom_call.1} parent=1 // pred_region
      %s41 = ssub.s32 0, 0
      %s42 = smul.u32 8, %s41
      %44 = vsyncadd [#allocation12], 0
      %s45 = smul.addr %s42, 8
      %s46 = scalar_lea.hbm %s1, %s45
      %s47 = sshll.u32 %s46, 4
      %s48 = int_to_ptr.hbm [resolvable:$true] %s47
      %s49 = sshll.u32 [#allocation11], 4
      %s50 = int_to_ptr.vmem [resolvable:$true] %s49
      %55 = dma.hbm_to_vmem [thread:$0]  %s48, 1024, %s50, [#allocation12], 128, 128, 8
    $region9: #{tpu_custom_call.1} parent=1 // pred_fallthru
      _
    // Predicated region
    $region10: #{tpu_custom_call.1} parent=1 // pred_check
      _
    $region11: #{tpu_custom_call.1} parent=1 // pred_check_branch
      %57 = sbr.rel (0) target = $region13
    $region12: #{tpu_custom_call.1} parent=1 // pred_region
      _
    $region13: #{tpu_custom_call.1} parent=1 // pred_fallthru
      _
    // Predicated region
    $region14: #{tpu_custom_call.1} parent=1 // pred_check
      _
    $region15: #{tpu_custom_call.1} parent=1 // pred_check_branch
      %59 = sbr.rel (0) target = $region17
    $region16: #{tpu_custom_call.1} parent=1 // pred_region
      %61 = vsyncadd [#allocation12], 0
      %s62 = sshll.u32 %s3, 4
      %s63 = int_to_ptr.hbm [resolvable:$true] %s62
      %s64 = sshll.u32 [#allocation13], 4
      %s65 = int_to_ptr.vmem [resolvable:$true] %s64
      %70 = dma.hbm_to_vmem [thread:$0]  %s63, 1024, %s65, [#allocation12], 512, 512, 32
    $region17: #{tpu_custom_call.1} parent=1 // pred_fallthru
      _
    // Predicated region
    $region18: #{tpu_custom_call.1} parent=1 // pred_check
      _
    $region19: #{tpu_custom_call.1} parent=1 // pred_check_branch
      %72 = sbr.rel (0) target = $region21
    $region20: #{tpu_custom_call.1} parent=1 // pred_region
      %74 = vsyncadd [#allocation15], 0
      %s75 = sshll.u32 %s4, 4
      %s76 = int_to_ptr.hbm [resolvable:$true] %s75
      %s77 = sshll.u32 [#allocation14], 4
      %s78 = int_to_ptr.vmem [resolvable:$true] %s77
      %83 = dma.hbm_to_vmem [thread:$0]  %s76, 1024, %s78, [#allocation15], 512, 512, 32
    $region21: #{tpu_custom_call.1} parent=1 // pred_fallthru
      _
    // Predicated region
    $region22: #{tpu_custom_call.1} parent=1 // pred_check
      _
    $region23: #{tpu_custom_call.1} parent=1 // pred_check_branch
      %85 = sbr.rel (0) target = $region25
    $region24: #{tpu_custom_call.1} parent=1 // pred_region
      %87 = vsyncadd [#allocation15], 0
      %s88 = sshll.u32 %s5, 4
      %s89 = int_to_ptr.hbm [resolvable:$true] %s88
      %s90 = sshll.u32 [#allocation16], 4
      %s91 = int_to_ptr.vmem [resolvable:$true] %s90
      %96 = dma.hbm_to_vmem [thread:$0]  %s89, 8192, %s91, [#allocation15], 512, 512, 32
    $region25: #{tpu_custom_call.1} parent=1 // pred_fallthru
      _
    // Predicated region
    $region26: #{tpu_custom_call.1} parent=1 // pred_check
      _
    $region27: #{tpu_custom_call.1} parent=1 // pred_check_branch
      %98 = sbr.rel (0) target = $region29
    $region28: #{tpu_custom_call.1} parent=1 // pred_region
      %100 = vsyncadd [#allocation18], 0
      %s101 = sshll.u32 %s6, 4
      %s102 = int_to_ptr.hbm [resolvable:$true] %s101
      %s103 = sshll.u32 [#allocation17], 4
      %s104 = int_to_ptr.vmem [resolvable:$true] %s103
      %109 = dma.hbm_to_vmem [thread:$0]  %s102, 8192, %s104, [#allocation18], 512, 512, 32
    $region29: #{tpu_custom_call.1} parent=1 // pred_fallthru
      _
    // Predicated region
    $region30: #{tpu_custom_call.1} parent=1 // pred_check
      _
    $region31: #{tpu_custom_call.1} parent=1 // pred_check_branch
      %111 = sbr.rel (0) target = $region33
    $region32: #{tpu_custom_call.1} parent=1 // pred_region
      _
    $region33: #{tpu_custom_call.1} parent=1 // pred_fallthru
      _
    // Predicated region
    $region34: #{tpu_custom_call.1} parent=1 // pred_check
      _
    $region35: #{tpu_custom_call.1} parent=1 // pred_check_branch
      %113 = sbr.rel (0) target = $region37
    $region36: #{tpu_custom_call.1} parent=1 // pred_region
      _
    $region37: #{tpu_custom_call.1} parent=1 // pred_fallthru
      _
    // Predicated region
    $region38: #{tpu_custom_call.1} parent=1 // pred_check
      _
    $region39: #{tpu_custom_call.1} parent=1 // pred_check_branch
      %115 = sbr.rel (0) target = $region41
    $region40: #{tpu_custom_call.1} parent=1 // pred_region
      %117 = vsyncadd [#allocation18], 0
      %s118 = sshll.u32 %s9, 4
      %s119 = int_to_ptr.hbm [resolvable:$true] %s118
      %s120 = sshll.u32 [#allocation19], 4
      %s121 = int_to_ptr.vmem [resolvable:$true] %s120
      %126 = dma.hbm_to_vmem [thread:$0]  %s119, 16384, %s121, [#allocation18], 512, 512, 32
    $region41: #{tpu_custom_call.1} parent=1 // pred_fallthru
      _
    // Predicated region
    $region42: #{tpu_custom_call.1} parent=1 // pred_check
      _
    $region43: #{tpu_custom_call.1} parent=1 // pred_check_branch
      %128 = sbr.rel (0) target = $region45
    $region44: #{tpu_custom_call.1} parent=1 // pred_region
      _
    $region45: #{tpu_custom_call.1} parent=1 // pred_fallthru
      _
    // Predicated region
    $region46: #{tpu_custom_call.1} parent=1 // pred_check
      _
    $region47: #{tpu_custom_call.1} parent=1 // pred_check_branch
      %130 = sbr.rel (0) target = $region49
    $region48: #{tpu_custom_call.1} parent=1 // pred_region
      %132 = vsyncadd [#allocation21], 0
      %s133 = sshll.u32 %s11, 4
      %s134 = int_to_ptr.hbm [resolvable:$true] %s133
      %s135 = sshll.u32 [#allocation20], 4
      %s136 = int_to_ptr.vmem [resolvable:$true] %s135
      %141 = dma.hbm_to_vmem [thread:$0]  %s134, 16384, %s136, [#allocation21], 256, 256, 16
    $region49: #{tpu_custom_call.1} parent=1 // pred_fallthru
      _
    // Predicated region
    $region50: #{tpu_custom_call.1} parent=1 // pred_check
      _
    $region51: #{tpu_custom_call.1} parent=1 // pred_check_branch
      %143 = sbr.rel (0) target = $region53
    $region52: #{tpu_custom_call.1} parent=1 // pred_region
      _
    $region53: #{tpu_custom_call.1} parent=1 // pred_fallthru
      _
    // Predicated region
    $region54: #{tpu_custom_call.1} parent=1 // pred_check
      _
    $region55: #{tpu_custom_call.1} parent=1 // pred_check_branch
      %145 = sbr.rel (0) target = $region57
    $region56: #{tpu_custom_call.1} parent=1 // pred_region
      %147 = vsyncadd [#allocation21], 0
      %s148 = sshll.u32 %s13, 4
      %s149 = int_to_ptr.hbm [resolvable:$true] %s148
      %s150 = sshll.u32 [#allocation22], 4
      %s151 = int_to_ptr.vmem [resolvable:$true] %s150
      %156 = dma.hbm_to_vmem [thread:$0]  %s149, 4096, %s151, [#allocation21], 128, 128, 8
    $region57: #{tpu_custom_call.1} parent=1 // pred_fallthru
      _
    // Predicated region
    $region58: #{tpu_custom_call.1} parent=1 // pred_check
      _
    $region59: #{tpu_custom_call.1} parent=1 // pred_check_branch
      %158 = sbr.rel (0) target = $region61
    $region60: #{tpu_custom_call.1} parent=1 // pred_region
      _
    $region61: #{tpu_custom_call.1} parent=1 // pred_fallthru
      _
    // Predicated region
    $region62: #{tpu_custom_call.1} parent=1 // pred_check
      _
    $region63: #{tpu_custom_call.1} parent=1 // pred_check_branch
      %160 = sbr.rel (0) target = $region65
    $region64: #{tpu_custom_call.1} parent=1 // pred_region
      %162 = dma.done [#allocation9], 1024
    $region65: #{tpu_custom_call.1} parent=1 // pred_fallthru
      _
    // Predicated region
    $region66: #{tpu_custom_call.1} parent=1 // pred_check
      _
    $region67: #{tpu_custom_call.1} parent=1 // pred_check_branch
      %164 = sbr.rel (0) target = $region69
    $region68: #{tpu_custom_call.1} parent=1 // pred_region
      %166 = dma.done [#allocation12], 1024
    $region69: #{tpu_custom_call.1} parent=1 // pred_fallthru
      _
    // Predicated region
    $region70: #{tpu_custom_call.1} parent=1 // pred_check
      _
    $region71: #{tpu_custom_call.1} parent=1 // pred_check_branch
      %168 = sbr.rel (0) target = $region73
    $region72: #{tpu_custom_call.1} parent=1 // pred_region
      %170 = dma.done [#allocation12], 1024
    $region73: #{tpu_custom_call.1} parent=1 // pred_fallthru
      _
    // Predicated region
    $region74: #{tpu_custom_call.1} parent=1 // pred_check
      _
    $region75: #{tpu_custom_call.1} parent=1 // pred_check_branch
      %172 = sbr.rel (0) target = $region77
    $region76: #{tpu_custom_call.1} parent=1 // pred_region
      %174 = dma.done [#allocation15], 1024
    $region77: #{tpu_custom_call.1} parent=1 // pred_fallthru
      _
    // Predicated region
    $region78: #{tpu_custom_call.1} parent=1 // pred_check
      _
    $region79: #{tpu_custom_call.1} parent=1 // pred_check_branch
      %176 = sbr.rel (0) target = $region81
    $region80: #{tpu_custom_call.1} parent=1 // pred_region
      %178 = dma.done [#allocation15], 8192
    $region81: #{tpu_custom_call.1} parent=1 // pred_fallthru
      _
    // Predicated region
    $region82: #{tpu_custom_call.1} parent=1 // pred_check
      _
    $region83: #{tpu_custom_call.1} parent=1 // pred_check_branch
      %180 = sbr.rel (0) target = $region85
    $region84: #{tpu_custom_call.1} parent=1 // pred_region
      %182 = dma.done [#allocation18], 8192
    $region85: #{tpu_custom_call.1} parent=1 // pred_fallthru
      _
    // Predicated region
    $region86: #{tpu_custom_call.1} parent=1 // pred_check
      _
    $region87: #{tpu_custom_call.1} parent=1 // pred_check_branch
      %184 = sbr.rel (0) target = $region89
    $region88: #{tpu_custom_call.1} parent=1 // pred_region
      %186 = dma.done [#allocation18], 16384
    $region89: #{tpu_custom_call.1} parent=1 // pred_fallthru
      _
    // Predicated region
    $region90: #{tpu_custom_call.1} parent=1 // pred_check
      _
    $region91: #{tpu_custom_call.1} parent=1 // pred_check_branch
      %188 = sbr.rel (0) target = $region93
    $region92: #{tpu_custom_call.1} parent=1 // pred_region
      %190 = dma.done [#allocation21], 16384
    $region93: #{tpu_custom_call.1} parent=1 // pred_fallthru
      _
    // Predicated region
    $region94: #{tpu_custom_call.1} parent=1 // pred_check
      _
    $region95: #{tpu_custom_call.1} parent=1 // pred_check_branch
      %192 = sbr.rel (0) target = $region97
    $region96: #{tpu_custom_call.1} parent=1 // pred_region
      %194 = dma.done [#allocation21], 4096
    $region97: #{tpu_custom_call.1} parent=1 // pred_fallthru
      _
    %s195 = ssub.s32 0, 0
    %s196 = smul.u32 8, %s195
    %p197 = scmp.eq.s32.totalorder 0, 0
    // Predicated region
    $region98: #{tpu_custom_call.1} parent=1 // pred_check
      %p198 = pneg %p197
    $region99: #{tpu_custom_call.1} parent=1 // pred_check_branch
      %200 = sbr.rel (%p198) target = $region101
    $region100: #{tpu_custom_call.1} parent=1 // pred_region
      %201 = vst [vmem:[#allocation4] sm:$0xff] 0.0
      %202 = vst [vmem:[#allocation5] sm:$0xff] 0.0
      %203 = vst [vmem:[#allocation6] sm:$0xff] 0.0
      %204 = vst [vmem:[#allocation7] sm:$0xff] 0.0
    $region101: #{tpu_custom_call.1} parent=1 // pred_fallthru
      _
    %v205 = vld [vmem:[#allocation8] sm:$0xff]
    %v206 = vld [vmem:[#allocation8 + $0x8] sm:$0xff]
    %v207 = vld [vmem:[#allocation8 + $0x10] sm:$0xff]
    %v208 = vld [vmem:[#allocation8 + $0x18] sm:$0xff]
    %v209 = vld [vmem:[#allocation8 + $0x20] sm:$0xff]
    %v210 = vld [vmem:[#allocation8 + $0x28] sm:$0xff]
    %v211 = vld [vmem:[#allocation8 + $0x30] sm:$0xff]
    %v212 = vld [vmem:[#allocation8 + $0x38] sm:$0xff]
    %v213 = vld [vmem:[#allocation11] sm:$0xff]
    %v214 = vld [vmem:[#allocation11 + $0x8] sm:$0xff]
    %v215 = vld [vmem:[#allocation11 + $0x10] sm:$0xff]
    %v216 = vld [vmem:[#allocation11 + $0x18] sm:$0xff]
    %v217 = vld [vmem:[#allocation11 + $0x20] sm:$0xff]
    %v218 = vld [vmem:[#allocation11 + $0x28] sm:$0xff]
    %v219 = vld [vmem:[#allocation11 + $0x30] sm:$0xff]
    %v220 = vld [vmem:[#allocation11 + $0x38] sm:$0xff]
    %v221 = vld [vmem:[#allocation13] sm:$0xff]
    %v222 = vld [vmem:[#allocation13 + $0x8] sm:$0xff]
    %v223 = vld [vmem:[#allocation13 + $0x10] sm:$0xff]
    %v224 = vld [vmem:[#allocation13 + $0x18] sm:$0xff]
    %v225 = vld [vmem:[#allocation13 + $0x20] sm:$0xff]
    %v226 = vld [vmem:[#allocation13 + $0x28] sm:$0xff]
    %v227 = vld [vmem:[#allocation13 + $0x30] sm:$0xff]
    %v228 = vld [vmem:[#allocation13 + $0x38] sm:$0xff]
    %v229 = vld [vmem:[%s7] sm:$0xf]
    %v231 = vperm.slane %v229, 0
    %v232 = vperm.slane %v229, 1
    %v233 = vperm.slane %v229, 2
    %v234 = vperm.slane %v229, 3
    %vm239 = vcmask 130048
    %v241 = vsel %vm239, %v205, 0
    %v244 = vsel %vm239, %v206, 0
    %v247 = vsel %vm239, %v207, 0
    %v250 = vsel %vm239, %v208, 0
    %v253 = vsel %vm239, %v209, 0
    %v256 = vsel %vm239, %v210, 0
    %v259 = vsel %vm239, %v211, 0
    %v262 = vsel %vm239, %v212, 0
    %264 = vmatpush.msra.mxu0 0.0
    %265 = vmatpush.msra.mxu0 0.0
    %266 = vmatpush.msra.mxu0 0.0
    %267 = vmatpush.msra.mxu0 0.0
    %268 = vmatpush.msra.mxu0 0.0
    %269 = vmatpush.msra.mxu0 0.0
    %270 = vmatpush.msra.mxu0 0.0
    %271 = vmatpush.msra.mxu0 0.0
    %272 = vmatpush.msra.mxu0 0.0
    %273 = vmatpush.msra.mxu0 0.0
    %274 = vmatpush.msra.mxu0 0.0
    %275 = vmatpush.msra.mxu0 0.0
    %276 = vmatpush.msra.mxu0 0.0
    %277 = vmatpush.msra.mxu0 0.0
    %278 = vmatpush.msra.mxu0 %v225
    %279 = vmatpush.msra.mxu0 %v221
    %280 = vmatmul.f32.gmra.mxu0 %v241
    %v281 = vpop.f32.mrf.mxu0
    %v282 = vadd.f32 %v231, %v281
    %283 = vmatmul.f32.gmra.mxu0 %v244
    %v284 = vpop.f32.mrf.mxu0
    %v285 = vadd.f32 %v231, %v284
    %286 = vmatmul.f32.gmra.mxu0 %v247
    %v287 = vpop.f32.mrf.mxu0
    %v288 = vadd.f32 %v231, %v287
    %289 = vmatmul.f32.gmra.mxu0 %v250
    %v290 = vpop.f32.mrf.mxu0
    %v291 = vadd.f32 %v231, %v290
    %292 = vmatmul.f32.gmra.mxu0 %v253
    %v293 = vpop.f32.mrf.mxu0
    %v294 = vadd.f32 %v231, %v293
    %295 = vmatmul.f32.gmra.mxu0 %v256
    %v296 = vpop.f32.mrf.mxu0
    %v297 = vadd.f32 %v231, %v296
    %298 = vmatmul.f32.gmra.mxu0 %v259
    %v299 = vpop.f32.mrf.mxu0
    %v300 = vadd.f32 %v231, %v299
    %301 = vmatmul.f32.gmra.mxu0 %v262
    %v302 = vpop.f32.mrf.mxu0
    %v303 = vadd.f32 %v231, %v302
    %304 = vdwg.mxu0
    %305 = vmatpush.msra.mxu0 0.0
    %306 = vmatpush.msra.mxu0 0.0
    %307 = vmatpush.msra.mxu0 0.0
    %308 = vmatpush.msra.mxu0 0.0
    %309 = vmatpush.msra.mxu0 0.0
    %310 = vmatpush.msra.mxu0 0.0
    %311 = vmatpush.msra.mxu0 0.0
    %312 = vmatpush.msra.mxu0 0.0
    %313 = vmatpush.msra.mxu0 0.0
    %314 = vmatpush.msra.mxu0 0.0
    %315 = vmatpush.msra.mxu0 0.0
    %316 = vmatpush.msra.mxu0 0.0
    %317 = vmatpush.msra.mxu0 0.0
    %318 = vmatpush.msra.mxu0 0.0
    %319 = vmatpush.msra.mxu0 %v226
    %320 = vmatpush.msra.mxu0 %v222
    %321 = vmatmul.f32.gmra.mxu0 %v241
    %v322 = vpop.f32.mrf.mxu0
    %v323 = vadd.f32 %v232, %v322
    %324 = vmatmul.f32.gmra.mxu0 %v244
    %v325 = vpop.f32.mrf.mxu0
    %v326 = vadd.f32 %v232, %v325
    %327 = vmatmul.f32.gmra.mxu0 %v247
    %v328 = vpop.f32.mrf.mxu0
    %v329 = vadd.f32 %v232, %v328
    %330 = vmatmul.f32.gmra.mxu0 %v250
    %v331 = vpop.f32.mrf.mxu0
    %v332 = vadd.f32 %v232, %v331
    %333 = vmatmul.f32.gmra.mxu0 %v253
    %v334 = vpop.f32.mrf.mxu0
    %v335 = vadd.f32 %v232, %v334
    %336 = vmatmul.f32.gmra.mxu0 %v256
    %v337 = vpop.f32.mrf.mxu0
    %v338 = vadd.f32 %v232, %v337
    %339 = vmatmul.f32.gmra.mxu0 %v259
    %v340 = vpop.f32.mrf.mxu0
    %v341 = vadd.f32 %v232, %v340
    %342 = vmatmul.f32.gmra.mxu0 %v262
    %v343 = vpop.f32.mrf.mxu0
    %v344 = vadd.f32 %v232, %v343
    %345 = vdwg.mxu0
    %346 = vmatpush.msra.mxu0 0.0
    %347 = vmatpush.msra.mxu0 0.0
    %348 = vmatpush.msra.mxu0 0.0
    %349 = vmatpush.msra.mxu0 0.0
    %350 = vmatpush.msra.mxu0 0.0
    %351 = vmatpush.msra.mxu0 0.0
    %352 = vmatpush.msra.mxu0 0.0
    %353 = vmatpush.msra.mxu0 0.0
    %354 = vmatpush.msra.mxu0 0.0
    %355 = vmatpush.msra.mxu0 0.0
    %356 = vmatpush.msra.mxu0 0.0
    %357 = vmatpush.msra.mxu0 0.0
    %358 = vmatpush.msra.mxu0 0.0
    %359 = vmatpush.msra.mxu0 0.0
    %360 = vmatpush.msra.mxu0 %v227
    %361 = vmatpush.msra.mxu0 %v223
    %362 = vmatmul.f32.gmra.mxu0 %v241
    %v363 = vpop.f32.mrf.mxu0
    %v364 = vadd.f32 %v233, %v363
    %365 = vmatmul.f32.gmra.mxu0 %v244
    %v366 = vpop.f32.mrf.mxu0
    %v367 = vadd.f32 %v233, %v366
    %368 = vmatmul.f32.gmra.mxu0 %v247
    %v369 = vpop.f32.mrf.mxu0
    %v370 = vadd.f32 %v233, %v369
    %371 = vmatmul.f32.gmra.mxu0 %v250
    %v372 = vpop.f32.mrf.mxu0
    %v373 = vadd.f32 %v233, %v372
    %374 = vmatmul.f32.gmra.mxu0 %v253
    %v375 = vpop.f32.mrf.mxu0
    %v376 = vadd.f32 %v233, %v375
    %377 = vmatmul.f32.gmra.mxu0 %v256
    %v378 = vpop.f32.mrf.mxu0
    %v379 = vadd.f32 %v233, %v378
    %380 = vmatmul.f32.gmra.mxu0 %v259
    %v381 = vpop.f32.mrf.mxu0
    %v382 = vadd.f32 %v233, %v381
    %383 = vmatmul.f32.gmra.mxu0 %v262
    %v384 = vpop.f32.mrf.mxu0
    %v385 = vadd.f32 %v233, %v384
    %386 = vdwg.mxu0
    %387 = vmatpush.msra.mxu0 0.0
    %388 = vmatpush.msra.mxu0 0.0
    %389 = vmatpush.msra.mxu0 0.0
    %390 = vmatpush.msra.mxu0 0.0
    %391 = vmatpush.msra.mxu0 0.0
    %392 = vmatpush.msra.mxu0 0.0
    %393 = vmatpush.msra.mxu0 0.0
    %394 = vmatpush.msra.mxu0 0.0
    %395 = vmatpush.msra.mxu0 0.0
    %396 = vmatpush.msra.mxu0 0.0
    %397 = vmatpush.msra.mxu0 0.0
    %398 = vmatpush.msra.mxu0 0.0
    %399 = vmatpush.msra.mxu0 0.0
    %400 = vmatpush.msra.mxu0 0.0
    %401 = vmatpush.msra.mxu0 %v228
    %402 = vmatpush.msra.mxu0 %v224
    %403 = vmatmul.f32.gmra.mxu0 %v241
    %v404 = vpop.f32.mrf.mxu0
    %v405 = vadd.f32 %v234, %v404
    %406 = vmatmul.f32.gmra.mxu0 %v244
    %v407 = vpop.f32.mrf.mxu0
    %v408 = vadd.f32 %v234, %v407
    %409 = vmatmul.f32.gmra.mxu0 %v247
    %v410 = vpop.f32.mrf.mxu0
    %v411 = vadd.f32 %v234, %v410
    %412 = vmatmul.f32.gmra.mxu0 %v250
    %v413 = vpop.f32.mrf.mxu0
    %v414 = vadd.f32 %v234, %v413
    %415 = vmatmul.f32.gmra.mxu0 %v253
    %v416 = vpop.f32.mrf.mxu0
    %v417 = vadd.f32 %v234, %v416
    %418 = vmatmul.f32.gmra.mxu0 %v256
    %v419 = vpop.f32.mrf.mxu0
    %v420 = vadd.f32 %v234, %v419
    %421 = vmatmul.f32.gmra.mxu0 %v259
    %v422 = vpop.f32.mrf.mxu0
    %v423 = vadd.f32 %v234, %v422
    %424 = vmatmul.f32.gmra.mxu0 %v262
    %v425 = vpop.f32.mrf.mxu0
    %v426 = vadd.f32 %v234, %v425
    %427 = vdwg.mxu0
    %428 = vst [vmem:[#allocation2] sm:$0xff] %v282
    %429 = vst [vmem:[#allocation2 + $0x8] sm:$0xff] %v323
    %430 = vst [vmem:[#allocation2 + $0x10] sm:$0xff] %v364
    %431 = vst [vmem:[#allocation2 + $0x18] sm:$0xff] %v405
    %432 = vst [vmem:[#allocation2 + $0x20] sm:$0xff] %v285
    %433 = vst [vmem:[#allocation2 + $0x28] sm:$0xff] %v326
    %434 = vst [vmem:[#allocation2 + $0x30] sm:$0xff] %v367
    %435 = vst [vmem:[#allocation2 + $0x38] sm:$0xff] %v408
    %436 = vst [vmem:[#allocation2 + $0x40] sm:$0xff] %v288
    %437 = vst [vmem:[#allocation2 + $0x48] sm:$0xff] %v329
    %438 = vst [vmem:[#allocation2 + $0x50] sm:$0xff] %v370
    %439 = vst [vmem:[#allocation2 + $0x58] sm:$0xff] %v411
    %440 = vst [vmem:[#allocation2 + $0x60] sm:$0xff] %v291
    %441 = vst [vmem:[#allocation2 + $0x68] sm:$0xff] %v332
    %442 = vst [vmem:[#allocation2 + $0x70] sm:$0xff] %v373
    %443 = vst [vmem:[#allocation2 + $0x78] sm:$0xff] %v414
    %444 = vst [vmem:[#allocation2 + $0x80] sm:$0xff] %v294
    %445 = vst [vmem:[#allocation2 + $0x88] sm:$0xff] %v335
    %446 = vst [vmem:[#allocation2 + $0x90] sm:$0xff] %v376
    %447 = vst [vmem:[#allocation2 + $0x98] sm:$0xff] %v417
    %448 = vst [vmem:[#allocation2 + $0xa0] sm:$0xff] %v297
    %449 = vst [vmem:[#allocation2 + $0xa8] sm:$0xff] %v338
    %450 = vst [vmem:[#allocation2 + $0xb0] sm:$0xff] %v379
    %451 = vst [vmem:[#allocation2 + $0xb8] sm:$0xff] %v420
    %452 = vst [vmem:[#allocation2 + $0xc0] sm:$0xff] %v300
    %453 = vst [vmem:[#allocation2 + $0xc8] sm:$0xff] %v341
    %454 = vst [vmem:[#allocation2 + $0xd0] sm:$0xff] %v382
    %455 = vst [vmem:[#allocation2 + $0xd8] sm:$0xff] %v423
    %456 = vst [vmem:[#allocation2 + $0xe0] sm:$0xff] %v303
    %457 = vst [vmem:[#allocation2 + $0xe8] sm:$0xff] %v344
    %458 = vst [vmem:[#allocation2 + $0xf0] sm:$0xff] %v385
    %459 = vst [vmem:[#allocation2 + $0xf8] sm:$0xff] %v426
    %v460 = vld [vmem:[#allocation14] sm:$0xff]
    %v461 = vld [vmem:[#allocation14 + $0x8] sm:$0xff]
    %v462 = vld [vmem:[#allocation14 + $0x10] sm:$0xff]
    %v463 = vld [vmem:[#allocation14 + $0x18] sm:$0xff]
    %v464 = vld [vmem:[#allocation14 + $0x20] sm:$0xff]
    %v465 = vld [vmem:[#allocation14 + $0x28] sm:$0xff]
    %v466 = vld [vmem:[#allocation14 + $0x30] sm:$0xff]
    %v467 = vld [vmem:[#allocation14 + $0x38] sm:$0xff]
    %v468 = vld [vmem:[%s8] sm:$0xf]
    %v470 = vperm.slane %v468, 0
    %v471 = vperm.slane %v468, 1
    %v472 = vperm.slane %v468, 2
    %v473 = vperm.slane %v468, 3
    %v479 = vsel %vm239, %v213, 0
    %v482 = vsel %vm239, %v214, 0
    %v485 = vsel %vm239, %v215, 0
    %v488 = vsel %vm239, %v216, 0
    %v491 = vsel %vm239, %v217, 0
    %v494 = vsel %vm239, %v218, 0
    %v497 = vsel %vm239, %v219, 0
    %v500 = vsel %vm239, %v220, 0
    %502 = vmatpush.msra.mxu0 0.0
    %503 = vmatpush.msra.mxu0 0.0
    %504 = vmatpush.msra.mxu0 0.0
    %505 = vmatpush.msra.mxu0 0.0
    %506 = vmatpush.msra.mxu0 0.0
    %507 = vmatpush.msra.mxu0 0.0
    %508 = vmatpush.msra.mxu0 0.0
    %509 = vmatpush.msra.mxu0 0.0
    %510 = vmatpush.msra.mxu0 0.0
    %511 = vmatpush.msra.mxu0 0.0
    %512 = vmatpush.msra.mxu0 0.0
    %513 = vmatpush.msra.mxu0 0.0
    %514 = vmatpush.msra.mxu0 0.0
    %515 = vmatpush.msra.mxu0 0.0
    %516 = vmatpush.msra.mxu0 %v464
    %517 = vmatpush.msra.mxu0 %v460
    %518 = vmatmul.f32.gmra.mxu0 %v479
    %v519 = vpop.f32.mrf.mxu0
    %v520 = vadd.f32 %v470, %v519
    %521 = vmatmul.f32.gmra.mxu0 %v482
    %v522 = vpop.f32.mrf.mxu0
    %v523 = vadd.f32 %v470, %v522
    %524 = vmatmul.f32.gmra.mxu0 %v485
    %v525 = vpop.f32.mrf.mxu0
    %v526 = vadd.f32 %v470, %v525
    %527 = vmatmul.f32.gmra.mxu0 %v488
    %v528 = vpop.f32.mrf.mxu0
    %v529 = vadd.f32 %v470, %v528
    %530 = vmatmul.f32.gmra.mxu0 %v491
    %v531 = vpop.f32.mrf.mxu0
    %v532 = vadd.f32 %v470, %v531
    %533 = vmatmul.f32.gmra.mxu0 %v494
    %v534 = vpop.f32.mrf.mxu0
    %v535 = vadd.f32 %v470, %v534
    %536 = vmatmul.f32.gmra.mxu0 %v497
    %v537 = vpop.f32.mrf.mxu0
    %v538 = vadd.f32 %v470, %v537
    %539 = vmatmul.f32.gmra.mxu0 %v500
    %v540 = vpop.f32.mrf.mxu0
    %v541 = vadd.f32 %v470, %v540
    %542 = vdwg.mxu0
    %543 = vmatpush.msra.mxu0 0.0
    %544 = vmatpush.msra.mxu0 0.0
    %545 = vmatpush.msra.mxu0 0.0
    %546 = vmatpush.msra.mxu0 0.0
    %547 = vmatpush.msra.mxu0 0.0
    %548 = vmatpush.msra.mxu0 0.0
    %549 = vmatpush.msra.mxu0 0.0
    %550 = vmatpush.msra.mxu0 0.0
    %551 = vmatpush.msra.mxu0 0.0
    %552 = vmatpush.msra.mxu0 0.0
    %553 = vmatpush.msra.mxu0 0.0
    %554 = vmatpush.msra.mxu0 0.0
    %555 = vmatpush.msra.mxu0 0.0
    %556 = vmatpush.msra.mxu0 0.0
    %557 = vmatpush.msra.mxu0 %v465
    %558 = vmatpush.msra.mxu0 %v461
    %559 = vmatmul.f32.gmra.mxu0 %v479
    %v560 = vpop.f32.mrf.mxu0
    %v561 = vadd.f32 %v471, %v560
    %562 = vmatmul.f32.gmra.mxu0 %v482
    %v563 = vpop.f32.mrf.mxu0
    %v564 = vadd.f32 %v471, %v563
    %565 = vmatmul.f32.gmra.mxu0 %v485
    %v566 = vpop.f32.mrf.mxu0
    %v567 = vadd.f32 %v471, %v566
    %568 = vmatmul.f32.gmra.mxu0 %v488
    %v569 = vpop.f32.mrf.mxu0
    %v570 = vadd.f32 %v471, %v569
    %571 = vmatmul.f32.gmra.mxu0 %v491
    %v572 = vpop.f32.mrf.mxu0
    %v573 = vadd.f32 %v471, %v572
    %574 = vmatmul.f32.gmra.mxu0 %v494
    %v575 = vpop.f32.mrf.mxu0
    %v576 = vadd.f32 %v471, %v575
    %577 = vmatmul.f32.gmra.mxu0 %v497
    %v578 = vpop.f32.mrf.mxu0
    %v579 = vadd.f32 %v471, %v578
    %580 = vmatmul.f32.gmra.mxu0 %v500
    %v581 = vpop.f32.mrf.mxu0
    %v582 = vadd.f32 %v471, %v581
    %583 = vdwg.mxu0
    %584 = vmatpush.msra.mxu0 0.0
    %585 = vmatpush.msra.mxu0 0.0
    %586 = vmatpush.msra.mxu0 0.0
    %587 = vmatpush.msra.mxu0 0.0
    %588 = vmatpush.msra.mxu0 0.0
    %589 = vmatpush.msra.mxu0 0.0
    %590 = vmatpush.msra.mxu0 0.0
    %591 = vmatpush.msra.mxu0 0.0
    %592 = vmatpush.msra.mxu0 0.0
    %593 = vmatpush.msra.mxu0 0.0
    %594 = vmatpush.msra.mxu0 0.0
    %595 = vmatpush.msra.mxu0 0.0
    %596 = vmatpush.msra.mxu0 0.0
    %597 = vmatpush.msra.mxu0 0.0
    %598 = vmatpush.msra.mxu0 %v466
    %599 = vmatpush.msra.mxu0 %v462
    %600 = vmatmul.f32.gmra.mxu0 %v479
    %v601 = vpop.f32.mrf.mxu0
    %v602 = vadd.f32 %v472, %v601
    %603 = vmatmul.f32.gmra.mxu0 %v482
    %v604 = vpop.f32.mrf.mxu0
    %v605 = vadd.f32 %v472, %v604
    %606 = vmatmul.f32.gmra.mxu0 %v485
    %v607 = vpop.f32.mrf.mxu0
    %v608 = vadd.f32 %v472, %v607
    %609 = vmatmul.f32.gmra.mxu0 %v488
    %v610 = vpop.f32.mrf.mxu0
    %v611 = vadd.f32 %v472, %v610
    %612 = vmatmul.f32.gmra.mxu0 %v491
    %v613 = vpop.f32.mrf.mxu0
    %v614 = vadd.f32 %v472, %v613
    %615 = vmatmul.f32.gmra.mxu0 %v494
    %v616 = vpop.f32.mrf.mxu0
    %v617 = vadd.f32 %v472, %v616
    %618 = vmatmul.f32.gmra.mxu0 %v497
    %v619 = vpop.f32.mrf.mxu0
    %v620 = vadd.f32 %v472, %v619
    %621 = vmatmul.f32.gmra.mxu0 %v500
    %v622 = vpop.f32.mrf.mxu0
    %v623 = vadd.f32 %v472, %v622
    %624 = vdwg.mxu0
    %625 = vmatpush.msra.mxu0 0.0
    %626 = vmatpush.msra.mxu0 0.0
    %627 = vmatpush.msra.mxu0 0.0
    %628 = vmatpush.msra.mxu0 0.0
    %629 = vmatpush.msra.mxu0 0.0
    %630 = vmatpush.msra.mxu0 0.0
    %631 = vmatpush.msra.mxu0 0.0
    %632 = vmatpush.msra.mxu0 0.0
    %633 = vmatpush.msra.mxu0 0.0
    %634 = vmatpush.msra.mxu0 0.0
    %635 = vmatpush.msra.mxu0 0.0
    %636 = vmatpush.msra.mxu0 0.0
    %637 = vmatpush.msra.mxu0 0.0
    %638 = vmatpush.msra.mxu0 0.0
    %639 = vmatpush.msra.mxu0 %v467
    %640 = vmatpush.msra.mxu0 %v463
    %641 = vmatmul.f32.gmra.mxu0 %v479
    %v642 = vpop.f32.mrf.mxu0
    %v643 = vadd.f32 %v473, %v642
    %644 = vmatmul.f32.gmra.mxu0 %v482
    %v645 = vpop.f32.mrf.mxu0
    %v646 = vadd.f32 %v473, %v645
    %647 = vmatmul.f32.gmra.mxu0 %v485
    %v648 = vpop.f32.mrf.mxu0
    %v649 = vadd.f32 %v473, %v648
    %650 = vmatmul.f32.gmra.mxu0 %v488
    %v651 = vpop.f32.mrf.mxu0
    %v652 = vadd.f32 %v473, %v651
    %653 = vmatmul.f32.gmra.mxu0 %v491
    %v654 = vpop.f32.mrf.mxu0
    %v655 = vadd.f32 %v473, %v654
    %656 = vmatmul.f32.gmra.mxu0 %v494
    %v657 = vpop.f32.mrf.mxu0
    %v658 = vadd.f32 %v473, %v657
    %659 = vmatmul.f32.gmra.mxu0 %v497
    %v660 = vpop.f32.mrf.mxu0
    %v661 = vadd.f32 %v473, %v660
    %662 = vmatmul.f32.gmra.mxu0 %v500
    %v663 = vpop.f32.mrf.mxu0
    %v664 = vadd.f32 %v473, %v663
    %665 = vdwg.mxu0
    %666 = vst [vmem:[#allocation3] sm:$0xff] %v520
    %667 = vst [vmem:[#allocation3 + $0x8] sm:$0xff] %v561
    %668 = vst [vmem:[#allocation3 + $0x10] sm:$0xff] %v602
    %669 = vst [vmem:[#allocation3 + $0x18] sm:$0xff] %v643
    %670 = vst [vmem:[#allocation3 + $0x20] sm:$0xff] %v523
    %671 = vst [vmem:[#allocation3 + $0x28] sm:$0xff] %v564
    %672 = vst [vmem:[#allocation3 + $0x30] sm:$0xff] %v605
    %673 = vst [vmem:[#allocation3 + $0x38] sm:$0xff] %v646
    %674 = vst [vmem:[#allocation3 + $0x40] sm:$0xff] %v526
    %675 = vst [vmem:[#allocation3 + $0x48] sm:$0xff] %v567
    %676 = vst [vmem:[#allocation3 + $0x50] sm:$0xff] %v608
    %677 = vst [vmem:[#allocation3 + $0x58] sm:$0xff] %v649
    %678 = vst [vmem:[#allocation3 + $0x60] sm:$0xff] %v529
    %679 = vst [vmem:[#allocation3 + $0x68] sm:$0xff] %v570
    %680 = vst [vmem:[#allocation3 + $0x70] sm:$0xff] %v611
    %681 = vst [vmem:[#allocation3 + $0x78] sm:$0xff] %v652
    %682 = vst [vmem:[#allocation3 + $0x80] sm:$0xff] %v532
    %683 = vst [vmem:[#allocation3 + $0x88] sm:$0xff] %v573
    %684 = vst [vmem:[#allocation3 + $0x90] sm:$0xff] %v614
    %685 = vst [vmem:[#allocation3 + $0x98] sm:$0xff] %v655
    %686 = vst [vmem:[#allocation3 + $0xa0] sm:$0xff] %v535
    %687 = vst [vmem:[#allocation3 + $0xa8] sm:$0xff] %v576
    %688 = vst [vmem:[#allocation3 + $0xb0] sm:$0xff] %v617
    %689 = vst [vmem:[#allocation3 + $0xb8] sm:$0xff] %v658
    %690 = vst [vmem:[#allocation3 + $0xc0] sm:$0xff] %v538
    %691 = vst [vmem:[#allocation3 + $0xc8] sm:$0xff] %v579
    %692 = vst [vmem:[#allocation3 + $0xd0] sm:$0xff] %v620
    %693 = vst [vmem:[#allocation3 + $0xd8] sm:$0xff] %v661
    %694 = vst [vmem:[#allocation3 + $0xe0] sm:$0xff] %v541
    %695 = vst [vmem:[#allocation3 + $0xe8] sm:$0xff] %v582
    %696 = vst [vmem:[#allocation3 + $0xf0] sm:$0xff] %v623
    %697 = vst [vmem:[#allocation3 + $0xf8] sm:$0xff] %v664
    %v698 = vld [vmem:[%s2] sm:$0xff]
    %v699 = vld [vmem:[#allocation16] sm:$0xff]
    %v700 = vld [vmem:[#allocation16 + $0x8] sm:$0xff]
    %v701 = vld [vmem:[#allocation16 + $0x10] sm:$0xff]
    %v702 = vld [vmem:[#allocation16 + $0x18] sm:$0xff]
    %v703 = vld [vmem:[#allocation16 + $0x20] sm:$0xff]
    %v704 = vld [vmem:[#allocation16 + $0x28] sm:$0xff]
    %v705 = vld [vmem:[#allocation16 + $0x30] sm:$0xff]
    %v706 = vld [vmem:[#allocation16 + $0x38] sm:$0xff]
    %v707 = vld [vmem:[#allocation16 + $0x40] sm:$0xff]
    %v708 = vld [vmem:[#allocation16 + $0x48] sm:$0xff]
    %v709 = vld [vmem:[#allocation16 + $0x50] sm:$0xff]
    %v710 = vld [vmem:[#allocation16 + $0x58] sm:$0xff]
    %v711 = vld [vmem:[#allocation16 + $0x60] sm:$0xff]
    %v712 = vld [vmem:[#allocation16 + $0x68] sm:$0xff]
    %v713 = vld [vmem:[#allocation16 + $0x70] sm:$0xff]
    %v714 = vld [vmem:[#allocation16 + $0x78] sm:$0xff]
    %v715 = vld [vmem:[#allocation16 + $0x80] sm:$0xff]
    %v716 = vld [vmem:[#allocation16 + $0x88] sm:$0xff]
    %v717 = vld [vmem:[#allocation16 + $0x90] sm:$0xff]
    %v718 = vld [vmem:[#allocation16 + $0x98] sm:$0xff]
    %v719 = vld [vmem:[#allocation16 + $0xa0] sm:$0xff]
    %v720 = vld [vmem:[#allocation16 + $0xa8] sm:$0xff]
    %v721 = vld [vmem:[#allocation16 + $0xb0] sm:$0xff]
    %v722 = vld [vmem:[#allocation16 + $0xb8] sm:$0xff]
    %v723 = vld [vmem:[#allocation16 + $0xc0] sm:$0xff]
    %v724 = vld [vmem:[#allocation16 + $0xc8] sm:$0xff]
    %v725 = vld [vmem:[#allocation16 + $0xd0] sm:$0xff]
    %v726 = vld [vmem:[#allocation16 + $0xd8] sm:$0xff]
    %v727 = vld [vmem:[#allocation16 + $0xe0] sm:$0xff]
    %v728 = vld [vmem:[#allocation16 + $0xe8] sm:$0xff]
    %v729 = vld [vmem:[#allocation16 + $0xf0] sm:$0xff]
    %v730 = vld [vmem:[#allocation16 + $0xf8] sm:$0xff]
    %v731 = vld [vmem:[#allocation16 + $0x100] sm:$0xff]
    %v732 = vld [vmem:[#allocation16 + $0x108] sm:$0xff]
    %v733 = vld [vmem:[#allocation16 + $0x110] sm:$0xff]
    %v734 = vld [vmem:[#allocation16 + $0x118] sm:$0xff]
    %v735 = vld [vmem:[#allocation16 + $0x120] sm:$0xff]
    %v736 = vld [vmem:[#allocation16 + $0x128] sm:$0xff]
    %v737 = vld [vmem:[#allocation16 + $0x130] sm:$0xff]
    %v738 = vld [vmem:[#allocation16 + $0x138] sm:$0xff]
    %v739 = vld [vmem:[#allocation16 + $0x140] sm:$0xff]
    %v740 = vld [vmem:[#allocation16 + $0x148] sm:$0xff]
    %v741 = vld [vmem:[#allocation16 + $0x150] sm:$0xff]
    %v742 = vld [vmem:[#allocation16 + $0x158] sm:$0xff]
    %v743 = vld [vmem:[#allocation16 + $0x160] sm:$0xff]
    %v744 = vld [vmem:[#allocation16 + $0x168] sm:$0xff]
    %v745 = vld [vmem:[#allocation16 + $0x170] sm:$0xff]
    %v746 = vld [vmem:[#allocation16 + $0x178] sm:$0xff]
    %v747 = vld [vmem:[#allocation16 + $0x180] sm:$0xff]
    %v748 = vld [vmem:[#allocation16 + $0x188] sm:$0xff]
    %v749 = vld [vmem:[#allocation16 + $0x190] sm:$0xff]
    %v750 = vld [vmem:[#allocation16 + $0x198] sm:$0xff]
    %v751 = vld [vmem:[#allocation16 + $0x1a0] sm:$0xff]
    %v752 = vld [vmem:[#allocation16 + $0x1a8] sm:$0xff]
    %v753 = vld [vmem:[#allocation16 + $0x1b0] sm:$0xff]
    %v754 = vld [vmem:[#allocation16 + $0x1b8] sm:$0xff]
    %v755 = vld [vmem:[#allocation16 + $0x1c0] sm:$0xff]
    %v756 = vld [vmem:[#allocation16 + $0x1c8] sm:$0xff]
    %v757 = vld [vmem:[#allocation16 + $0x1d0] sm:$0xff]
    %v758 = vld [vmem:[#allocation16 + $0x1d8] sm:$0xff]
    %v759 = vld [vmem:[#allocation16 + $0x1e0] sm:$0xff]
    %v760 = vld [vmem:[#allocation16 + $0x1e8] sm:$0xff]
    %v761 = vld [vmem:[#allocation16 + $0x1f0] sm:$0xff]
    %v762 = vld [vmem:[#allocation16 + $0x1f8] sm:$0xff]
    %v763 = vld [vmem:[#allocation17] sm:$0xff]
    %v764 = vld [vmem:[#allocation17 + $0x8] sm:$0xff]
    %v765 = vld [vmem:[#allocation17 + $0x10] sm:$0xff]
    %v766 = vld [vmem:[#allocation17 + $0x18] sm:$0xff]
    %v767 = vld [vmem:[#allocation17 + $0x20] sm:$0xff]
    %v768 = vld [vmem:[#allocation17 + $0x28] sm:$0xff]
    %v769 = vld [vmem:[#allocation17 + $0x30] sm:$0xff]
    %v770 = vld [vmem:[#allocation17 + $0x38] sm:$0xff]
    %v771 = vld [vmem:[#allocation17 + $0x40] sm:$0xff]
    %v772 = vld [vmem:[#allocation17 + $0x48] sm:$0xff]
    %v773 = vld [vmem:[#allocation17 + $0x50] sm:$0xff]
    %v774 = vld [vmem:[#allocation17 + $0x58] sm:$0xff]
    %v775 = vld [vmem:[#allocation17 + $0x60] sm:$0xff]
    %v776 = vld [vmem:[#allocation17 + $0x68] sm:$0xff]
    %v777 = vld [vmem:[#allocation17 + $0x70] sm:$0xff]
    %v778 = vld [vmem:[#allocation17 + $0x78] sm:$0xff]
    %v779 = vld [vmem:[#allocation17 + $0x80] sm:$0xff]
    %v780 = vld [vmem:[#allocation17 + $0x88] sm:$0xff]
    %v781 = vld [vmem:[#allocation17 + $0x90] sm:$0xff]
    %v782 = vld [vmem:[#allocation17 + $0x98] sm:$0xff]
    %v783 = vld [vmem:[#allocation17 + $0xa0] sm:$0xff]
    %v784 = vld [vmem:[#allocation17 + $0xa8] sm:$0xff]
    %v785 = vld [vmem:[#allocation17 + $0xb0] sm:$0xff]
    %v786 = vld [vmem:[#allocation17 + $0xb8] sm:$0xff]
    %v787 = vld [vmem:[#allocation17 + $0xc0] sm:$0xff]
    %v788 = vld [vmem:[#allocation17 + $0xc8] sm:$0xff]
    %v789 = vld [vmem:[#allocation17 + $0xd0] sm:$0xff]
    %v790 = vld [vmem:[#allocation17 + $0xd8] sm:$0xff]
    %v791 = vld [vmem:[#allocation17 + $0xe0] sm:$0xff]
    %v792 = vld [vmem:[#allocation17 + $0xe8] sm:$0xff]
    %v793 = vld [vmem:[#allocation17 + $0xf0] sm:$0xff]
    %v794 = vld [vmem:[#allocation17 + $0xf8] sm:$0xff]
    %v795 = vld [vmem:[#allocation17 + $0x100] sm:$0xff]
    %v796 = vld [vmem:[#allocation17 + $0x108] sm:$0xff]
    %v797 = vld [vmem:[#allocation17 + $0x110] sm:$0xff]
    %v798 = vld [vmem:[#allocation17 + $0x118] sm:$0xff]
    %v799 = vld [vmem:[#allocation17 + $0x120] sm:$0xff]
    %v800 = vld [vmem:[#allocation17 + $0x128] sm:$0xff]
    %v801 = vld [vmem:[#allocation17 + $0x130] sm:$0xff]
    %v802 = vld [vmem:[#allocation17 + $0x138] sm:$0xff]
    %v803 = vld [vmem:[#allocation17 + $0x140] sm:$0xff]
    %v804 = vld [vmem:[#allocation17 + $0x148] sm:$0xff]
    %v805 = vld [vmem:[#allocation17 + $0x150] sm:$0xff]
    %v806 = vld [vmem:[#allocation17 + $0x158] sm:$0xff]
    %v807 = vld [vmem:[#allocation17 + $0x160] sm:$0xff]
    %v808 = vld [vmem:[#allocation17 + $0x168] sm:$0xff]
    %v809 = vld [vmem:[#allocation17 + $0x170] sm:$0xff]
    %v810 = vld [vmem:[#allocation17 + $0x178] sm:$0xff]
    %v811 = vld [vmem:[#allocation17 + $0x180] sm:$0xff]
    %v812 = vld [vmem:[#allocation17 + $0x188] sm:$0xff]
    %v813 = vld [vmem:[#allocation17 + $0x190] sm:$0xff]
    %v814 = vld [vmem:[#allocation17 + $0x198] sm:$0xff]
    %v815 = vld [vmem:[#allocation17 + $0x1a0] sm:$0xff]
    %v816 = vld [vmem:[#allocation17 + $0x1a8] sm:$0xff]
    %v817 = vld [vmem:[#allocation17 + $0x1b0] sm:$0xff]
    %v818 = vld [vmem:[#allocation17 + $0x1b8] sm:$0xff]
    %v819 = vld [vmem:[#allocation17 + $0x1c0] sm:$0xff]
    %v820 = vld [vmem:[#allocation17 + $0x1c8] sm:$0xff]
    %v821 = vld [vmem:[#allocation17 + $0x1d0] sm:$0xff]
    %v822 = vld [vmem:[#allocation17 + $0x1d8] sm:$0xff]
    %v823 = vld [vmem:[#allocation17 + $0x1e0] sm:$0xff]
    %v824 = vld [vmem:[#allocation17 + $0x1e8] sm:$0xff]
    %v825 = vld [vmem:[#allocation17 + $0x1f0] sm:$0xff]
    %v826 = vld [vmem:[#allocation17 + $0x1f8] sm:$0xff]
    %s827 = smul.u32 0, 8
    %v828 = vld [vmem:[#allocation4] sm:$0xff]
    %v829 = vld [vmem:[#allocation5] sm:$0xff]
    %v830 = vld [vmem:[#allocation6] sm:$0xff]
    %v831 = vld [vmem:[#allocation7] sm:$0xff]
    loop: start=0, step=1, limit=8
    $region102: #{tpu_custom_call.1} parent=1 // loop_pre_header
      _
    $region103: #{tpu_custom_call.1} parent=1 // loop_header
      %s833 = sphi 0, %s837
      %p834 = scmp.ge.s32.totalorder %s833, 8
      %v838 = vphi %v828, %v1168
      %v839 = vphi %v829, %v1169
      %v840 = vphi %v830, %v1175
      %v841 = vphi %v831, %v1176
    $region104: #{tpu_custom_call.1} parent=1 // loop_header_branch
      %836 = sbr.rel (%p834) target = $region108
    $region105: #{tpu_custom_call.1} parent=1 // loop_body
      %s842 = smul.u32 %s833, 8
      %s843 = ssub.s32 7, %s833
      %s844 = smul.u32 %s843, 8
      %s845 = sshra.s32 %s842, 3
      %s846 = sand.u32 %s842, 7
      %s847 = smul.u32 %s845, 4
      %s848 = smul.addr %s847, 8
      %s849 = scalar_lea.vmem [#allocation2], %s848
      %v850 = vld [vmem:[%s849] sm:$0xff]
      %v851 = vld [vmem:[%s849 + $0x8] sm:$0xff]
      %v852 = vld [vmem:[%s849 + $0x10] sm:$0xff]
      %v853 = vld [vmem:[%s849 + $0x18] sm:$0xff]
      %854 = vmatpush.msra.mxu0 %v759
      %855 = vmatpush.msra.mxu0 %v755
      %856 = vmatpush.msra.mxu0 %v751
      %857 = vmatpush.msra.mxu0 %v747
      %858 = vmatpush.msra.mxu0 %v743
      %859 = vmatpush.msra.mxu0 %v739
      %860 = vmatpush.msra.mxu0 %v735
      %861 = vmatpush.msra.mxu0 %v731
      %862 = vmatpush.msra.mxu0 %v727
      %863 = vmatpush.msra.mxu0 %v723
      %864 = vmatpush.msra.mxu0 %v719
      %865 = vmatpush.msra.mxu0 %v715
      %866 = vmatpush.msra.mxu0 %v711
      %867 = vmatpush.msra.mxu0 %v707
      %868 = vmatpush.msra.mxu0 %v703
      %869 = vmatpush.msra.mxu0 %v699
      %870 = vmatmul.f32.gmra.mxu0 %v838
      %v871 = vpop.f32.mrf.mxu0
      %v872 = vadd.f32 0.0, %v871
      %873 = vdwg.mxu0
      %874 = vmatpush.msra.mxu0 %v760
      %875 = vmatpush.msra.mxu0 %v756
      %876 = vmatpush.msra.mxu0 %v752
      %877 = vmatpush.msra.mxu0 %v748
      %878 = vmatpush.msra.mxu0 %v744
      %879 = vmatpush.msra.mxu0 %v740
      %880 = vmatpush.msra.mxu0 %v736
      %881 = vmatpush.msra.mxu0 %v732
      %882 = vmatpush.msra.mxu0 %v728
      %883 = vmatpush.msra.mxu0 %v724
      %884 = vmatpush.msra.mxu0 %v720
      %885 = vmatpush.msra.mxu0 %v716
      %886 = vmatpush.msra.mxu0 %v712
      %887 = vmatpush.msra.mxu0 %v708
      %888 = vmatpush.msra.mxu0 %v704
      %889 = vmatpush.msra.mxu0 %v700
      %890 = vmatmul.f32.gmra.mxu0 %v838
      %v891 = vpop.f32.mrf.mxu0
      %v892 = vadd.f32 0.0, %v891
      %893 = vdwg.mxu0
      %894 = vmatpush.msra.mxu0 %v761
      %895 = vmatpush.msra.mxu0 %v757
      %896 = vmatpush.msra.mxu0 %v753
      %897 = vmatpush.msra.mxu0 %v749
      %898 = vmatpush.msra.mxu0 %v745
      %899 = vmatpush.msra.mxu0 %v741
      %900 = vmatpush.msra.mxu0 %v737
      %901 = vmatpush.msra.mxu0 %v733
      %902 = vmatpush.msra.mxu0 %v729
      %903 = vmatpush.msra.mxu0 %v725
      %904 = vmatpush.msra.mxu0 %v721
      %905 = vmatpush.msra.mxu0 %v717
      %906 = vmatpush.msra.mxu0 %v713
      %907 = vmatpush.msra.mxu0 %v709
      %908 = vmatpush.msra.mxu0 %v705
      %909 = vmatpush.msra.mxu0 %v701
      %910 = vmatmul.f32.gmra.mxu0 %v838
      %v911 = vpop.f32.mrf.mxu0
      %v912 = vadd.f32 0.0, %v911
      %913 = vdwg.mxu0
      %914 = vmatpush.msra.mxu0 %v762
      %915 = vmatpush.msra.mxu0 %v758
      %916 = vmatpush.msra.mxu0 %v754
      %917 = vmatpush.msra.mxu0 %v750
      %918 = vmatpush.msra.mxu0 %v746
      %919 = vmatpush.msra.mxu0 %v742
      %920 = vmatpush.msra.mxu0 %v738
      %921 = vmatpush.msra.mxu0 %v734
      %922 = vmatpush.msra.mxu0 %v730
      %923 = vmatpush.msra.mxu0 %v726
      %924 = vmatpush.msra.mxu0 %v722
      %925 = vmatpush.msra.mxu0 %v718
      %926 = vmatpush.msra.mxu0 %v714
      %927 = vmatpush.msra.mxu0 %v710
      %928 = vmatpush.msra.mxu0 %v706
      %929 = vmatpush.msra.mxu0 %v702
      %930 = vmatmul.f32.gmra.mxu0 %v838
      %v931 = vpop.f32.mrf.mxu0
      %v932 = vadd.f32 0.0, %v931
      %933 = vdwg.mxu0
      %v934 = vadd.f32 %v850, %v872
      %v935 = vadd.f32 %v851, %v892
      %v936 = vadd.f32 %v852, %v912
      %v937 = vadd.f32 %v853, %v932
      %v938 = vxor.u32 %v934, 2147483648
      %v939 = vmul.f32 %v938, 1.442695
      %v940 = vpow.pop %v939
      %v941 = vadd.f32 %v940, 1.0
      %v942 = vrcp.pop %v941
      %v943 = vmul.f32 %v941, %v942
      %v944 = vsub.f32 1.0, %v943
      %v945 = vmul.f32 %v942, %v944
      %v946 = vadd.f32 %v942, %v945
      %vm947 = vweird.f32 %v941
      %vm948 = vweird.f32 %v942
      %vm949 = vmor %vm947, %vm948
      %v950 = vsel %vm949, %v942, %v946
      %v951 = vand.u32 2147483647, %v941
      %vm952 = vcmp.eq.f32.partialorder %v951, 8.507059e+37
      %v953 = vand.u32 %v941, 2147483648
      %v954 = vor.u32 1.1754944e-38, %v953
      %v955 = vsel %vm952, %v954, %v950
      %v956 = vmul.f32 1.0, %v955
      %v957 = vxor.u32 %v935, 2147483648
      %v958 = vmul.f32 %v957, 1.442695
      %v959 = vpow.pop %v958
      %v960 = vadd.f32 %v959, 1.0
      %v961 = vrcp.pop %v960
      %v962 = vmul.f32 %v960, %v961
      %v963 = vsub.f32 1.0, %v962
      %v964 = vmul.f32 %v961, %v963
      %v965 = vadd.f32 %v961, %v964
      %vm966 = vweird.f32 %v960
      %vm967 = vweird.f32 %v961
      %vm968 = vmor %vm966, %vm967
      %v969 = vsel %vm968, %v961, %v965
      %v970 = vand.u32 2147483647, %v960
      %vm971 = vcmp.eq.f32.partialorder %v970, 8.507059e+37
      %v972 = vand.u32 %v960, 2147483648
      %v973 = vor.u32 1.1754944e-38, %v972
      %v974 = vsel %vm971, %v973, %v969
      %v975 = vmul.f32 1.0, %v974
      %v976 = vtanh.pop %v936
      %v977 = vxor.u32 %v937, 2147483648
      %v978 = vmul.f32 %v977, 1.442695
      %v979 = vpow.pop %v978
      %v980 = vadd.f32 %v979, 1.0
      %v981 = vrcp.pop %v980
      %v982 = vmul.f32 %v980, %v981
      %v983 = vsub.f32 1.0, %v982
      %v984 = vmul.f32 %v981, %v983
      %v985 = vadd.f32 %v981, %v984
      %vm986 = vweird.f32 %v980
      %vm987 = vweird.f32 %v981
      %vm988 = vmor %vm986, %vm987
      %v989 = vsel %vm988, %v981, %v985
      %v990 = vand.u32 2147483647, %v980
      %vm991 = vcmp.eq.f32.partialorder %v990, 8.507059e+37
      %v992 = vand.u32 %v980, 2147483648
      %v993 = vor.u32 1.1754944e-38, %v992
      %v994 = vsel %vm991, %v993, %v989
      %v995 = vmul.f32 1.0, %v994
      %v996 = vmul.f32 %v975, %v839
      %v997 = vmul.f32 %v956, %v976
      %v998 = vadd.f32 %v996, %v997
      %v999 = vtanh.pop %v998
      %v1000 = vmul.f32 %v995, %v999
      %s1001 = sshra.s32 %s844, 3
      %s1002 = sand.u32 %s844, 7
      %s1003 = smul.u32 %s1001, 4
      %s1004 = smul.addr %s1003, 8
      %s1005 = scalar_lea.vmem [#allocation3], %s1004
      %v1006 = vld [vmem:[%s1005] sm:$0xff]
      %v1007 = vld [vmem:[%s1005 + $0x8] sm:$0xff]
      %v1008 = vld [vmem:[%s1005 + $0x10] sm:$0xff]
      %v1009 = vld [vmem:[%s1005 + $0x18] sm:$0xff]
      %1010 = vmatpush.msra.mxu0 %v823
      %1011 = vmatpush.msra.mxu0 %v819
      %1012 = vmatpush.msra.mxu0 %v815
      %1013 = vmatpush.msra.mxu0 %v811
      %1014 = vmatpush.msra.mxu0 %v807
      %1015 = vmatpush.msra.mxu0 %v803
      %1016 = vmatpush.msra.mxu0 %v799
      %1017 = vmatpush.msra.mxu0 %v795
      %1018 = vmatpush.msra.mxu0 %v791
      %1019 = vmatpush.msra.mxu0 %v787
      %1020 = vmatpush.msra.mxu0 %v783
      %1021 = vmatpush.msra.mxu0 %v779
      %1022 = vmatpush.msra.mxu0 %v775
      %1023 = vmatpush.msra.mxu0 %v771
      %1024 = vmatpush.msra.mxu0 %v767
      %1025 = vmatpush.msra.mxu0 %v763
      %1026 = vmatmul.f32.gmra.mxu0 %v840
      %v1027 = vpop.f32.mrf.mxu0
      %v1028 = vadd.f32 0.0, %v1027
      %1029 = vdwg.mxu0
      %1030 = vmatpush.msra.mxu0 %v824
      %1031 = vmatpush.msra.mxu0 %v820
      %1032 = vmatpush.msra.mxu0 %v816
      %1033 = vmatpush.msra.mxu0 %v812
      %1034 = vmatpush.msra.mxu0 %v808
      %1035 = vmatpush.msra.mxu0 %v804
      %1036 = vmatpush.msra.mxu0 %v800
      %1037 = vmatpush.msra.mxu0 %v796
      %1038 = vmatpush.msra.mxu0 %v792
      %1039 = vmatpush.msra.mxu0 %v788
      %1040 = vmatpush.msra.mxu0 %v784
      %1041 = vmatpush.msra.mxu0 %v780
      %1042 = vmatpush.msra.mxu0 %v776
      %1043 = vmatpush.msra.mxu0 %v772
      %1044 = vmatpush.msra.mxu0 %v768
      %1045 = vmatpush.msra.mxu0 %v764
      %1046 = vmatmul.f32.gmra.mxu0 %v840
      %v1047 = vpop.f32.mrf.mxu0
      %v1048 = vadd.f32 0.0, %v1047
      %1049 = vdwg.mxu0
      %1050 = vmatpush.msra.mxu0 %v825
      %1051 = vmatpush.msra.mxu0 %v821
      %1052 = vmatpush.msra.mxu0 %v817
      %1053 = vmatpush.msra.mxu0 %v813
      %1054 = vmatpush.msra.mxu0 %v809
      %1055 = vmatpush.msra.mxu0 %v805
      %1056 = vmatpush.msra.mxu0 %v801
      %1057 = vmatpush.msra.mxu0 %v797
      %1058 = vmatpush.msra.mxu0 %v793
      %1059 = vmatpush.msra.mxu0 %v789
      %1060 = vmatpush.msra.mxu0 %v785
      %1061 = vmatpush.msra.mxu0 %v781
      %1062 = vmatpush.msra.mxu0 %v777
      %1063 = vmatpush.msra.mxu0 %v773
      %1064 = vmatpush.msra.mxu0 %v769
      %1065 = vmatpush.msra.mxu0 %v765
      %1066 = vmatmul.f32.gmra.mxu0 %v840
      %v1067 = vpop.f32.mrf.mxu0
      %v1068 = vadd.f32 0.0, %v1067
      %1069 = vdwg.mxu0
      %1070 = vmatpush.msra.mxu0 %v826
      %1071 = vmatpush.msra.mxu0 %v822
      %1072 = vmatpush.msra.mxu0 %v818
      %1073 = vmatpush.msra.mxu0 %v814
      %1074 = vmatpush.msra.mxu0 %v810
      %1075 = vmatpush.msra.mxu0 %v806
      %1076 = vmatpush.msra.mxu0 %v802
      %1077 = vmatpush.msra.mxu0 %v798
      %1078 = vmatpush.msra.mxu0 %v794
      %1079 = vmatpush.msra.mxu0 %v790
      %1080 = vmatpush.msra.mxu0 %v786
      %1081 = vmatpush.msra.mxu0 %v782
      %1082 = vmatpush.msra.mxu0 %v778
      %1083 = vmatpush.msra.mxu0 %v774
      %1084 = vmatpush.msra.mxu0 %v770
      %1085 = vmatpush.msra.mxu0 %v766
      %1086 = vmatmul.f32.gmra.mxu0 %v840
      %v1087 = vpop.f32.mrf.mxu0
      %v1088 = vadd.f32 0.0, %v1087
      %1089 = vdwg.mxu0
      %v1090 = vadd.f32 %v1006, %v1028
      %v1091 = vadd.f32 %v1007, %v1048
      %v1092 = vadd.f32 %v1008, %v1068
      %v1093 = vadd.f32 %v1009, %v1088
      %v1094 = vxor.u32 %v1090, 2147483648
      %v1095 = vmul.f32 %v1094, 1.442695
      %v1096 = vpow.pop %v1095
      %v1097 = vadd.f32 %v1096, 1.0
      %v1098 = vrcp.pop %v1097
      %v1099 = vmul.f32 %v1097, %v1098
      %v1100 = vsub.f32 1.0, %v1099
      %v1101 = vmul.f32 %v1098, %v1100
      %v1102 = vadd.f32 %v1098, %v1101
      %vm1103 = vweird.f32 %v1097
      %vm1104 = vweird.f32 %v1098
      %vm1105 = vmor %vm1103, %vm1104
      %v1106 = vsel %vm1105, %v1098, %v1102
      %v1107 = vand.u32 2147483647, %v1097
      %vm1108 = vcmp.eq.f32.partialorder %v1107, 8.507059e+37
      %v1109 = vand.u32 %v1097, 2147483648
      %v1110 = vor.u32 1.1754944e-38, %v1109
      %v1111 = vsel %vm1108, %v1110, %v1106
      %v1112 = vmul.f32 1.0, %v1111
      %v1113 = vxor.u32 %v1091, 2147483648
      %v1114 = vmul.f32 %v1113, 1.442695
      %v1115 = vpow.pop %v1114
      %v1116 = vadd.f32 %v1115, 1.0
      %v1117 = vrcp.pop %v1116
      %v1118 = vmul.f32 %v1116, %v1117
      %v1119 = vsub.f32 1.0, %v1118
      %v1120 = vmul.f32 %v1117, %v1119
      %v1121 = vadd.f32 %v1117, %v1120
      %vm1122 = vweird.f32 %v1116
      %vm1123 = vweird.f32 %v1117
      %vm1124 = vmor %vm1122, %vm1123
      %v1125 = vsel %vm1124, %v1117, %v1121
      %v1126 = vand.u32 2147483647, %v1116
      %vm1127 = vcmp.eq.f32.partialorder %v1126, 8.507059e+37
      %v1128 = vand.u32 %v1116, 2147483648
      %v1129 = vor.u32 1.1754944e-38, %v1128
      %v1130 = vsel %vm1127, %v1129, %v1125
      %v1131 = vmul.f32 1.0, %v1130
      %v1132 = vtanh.pop %v1092
      %v1133 = vxor.u32 %v1093, 2147483648
      %v1134 = vmul.f32 %v1133, 1.442695
      %v1135 = vpow.pop %v1134
      %v1136 = vadd.f32 %v1135, 1.0
      %v1137 = vrcp.pop %v1136
      %v1138 = vmul.f32 %v1136, %v1137
      %v1139 = vsub.f32 1.0, %v1138
      %v1140 = vmul.f32 %v1137, %v1139
      %v1141 = vadd.f32 %v1137, %v1140
      %vm1142 = vweird.f32 %v1136
      %vm1143 = vweird.f32 %v1137
      %vm1144 = vmor %vm1142, %vm1143
      %v1145 = vsel %vm1144, %v1137, %v1141
      %v1146 = vand.u32 2147483647, %v1136
      %vm1147 = vcmp.eq.f32.partialorder %v1146, 8.507059e+37
      %v1148 = vand.u32 %v1136, 2147483648
      %v1149 = vor.u32 1.1754944e-38, %v1148
      %v1150 = vsel %vm1147, %v1149, %v1145
      %v1151 = vmul.f32 1.0, %v1150
      %v1152 = vmul.f32 %v1131, %v841
      %v1153 = vmul.f32 %v1112, %v1132
      %v1154 = vadd.f32 %v1152, %v1153
      %v1155 = vtanh.pop %v1154
      %v1156 = vmul.f32 %v1151, %v1155
      %s1157 = sadd.s32 %s827, %s833
      %s1158 = ssub.s32 7, %s1157
      %v1159 = vstv %s1157
      %vm1160 = vcmp.lt.s32.totalorder %v1159, %v698
      %v1161 = vstv %s1158
      %vm1162 = vcmp.lt.s32.totalorder %v1161, %v698
      %v1163 = vsel %vm1160, 1, 0
      %1164 = vset.pattern.permute.xlu0 0
      %1165 = vperm.xlu0 %1164, %v1163
      %v1166 = vpop.permute.xlu0 %1165
      %vm1167 = vcmp.eq.s32.totalorder %v1166, 1
      %v1168 = vsel %vm1167, %v1000, %v838
      %v1169 = vsel %vm1167, %v998, %v839
      %v1170 = vsel %vm1162, 1, 0
      %1171 = vset.pattern.permute.xlu0 0
      %1172 = vperm.xlu0 %1171, %v1170
      %v1173 = vpop.permute.xlu0 %1172
      %vm1174 = vcmp.eq.s32.totalorder %v1173, 1
      %v1175 = vsel %vm1174, %v1156, %v840
      %v1176 = vsel %vm1174, %v1154, %v841
    $region106: #{tpu_custom_call.1} parent=1 // loop_footer
      %s837 = sadd.s32 1, %s833
    $region107: #{tpu_custom_call.1} parent=1 // loop_footer_branch
      %832 = sbr.rel target = $region103
    $region108: #{tpu_custom_call.1} parent=1 // loop_exit
      _
    %1177 = vst [vmem:[#allocation4] sm:$0xff] %v838
    %1178 = vst [vmem:[#allocation5] sm:$0xff] %v839
    %1179 = vst [vmem:[#allocation6] sm:$0xff] %v840
    %1180 = vst [vmem:[#allocation7] sm:$0xff] %v841
    // Predicated region
    $region109: #{tpu_custom_call.1} parent=1 // pred_check
      %p1181 = pneg %p197
    $region110: #{tpu_custom_call.1} parent=1 // pred_check_branch
      %1183 = sbr.rel (%p1181) target = $region112
    $region111: #{tpu_custom_call.1} parent=1 // pred_region
      %v1184 = vld [vmem:[#allocation4] sm:$0xff]
      %v1185 = vld [vmem:[#allocation6] sm:$0xff]
      %v1186 = vld [vmem:[#allocation19] sm:$0xff]
      %v1187 = vld [vmem:[#allocation19 + $0x8] sm:$0xff]
      %v1188 = vld [vmem:[#allocation19 + $0x10] sm:$0xff]
      %v1189 = vld [vmem:[#allocation19 + $0x18] sm:$0xff]
      %v1190 = vld [vmem:[#allocation19 + $0x20] sm:$0xff]
      %v1191 = vld [vmem:[#allocation19 + $0x28] sm:$0xff]
      %v1192 = vld [vmem:[#allocation19 + $0x30] sm:$0xff]
      %v1193 = vld [vmem:[#allocation19 + $0x38] sm:$0xff]
      %v1194 = vld [vmem:[#allocation19 + $0x40] sm:$0xff]
      %v1195 = vld [vmem:[#allocation19 + $0x48] sm:$0xff]
      %v1196 = vld [vmem:[#allocation19 + $0x50] sm:$0xff]
      %v1197 = vld [vmem:[#allocation19 + $0x58] sm:$0xff]
      %v1198 = vld [vmem:[#allocation19 + $0x60] sm:$0xff]
      %v1199 = vld [vmem:[#allocation19 + $0x68] sm:$0xff]
      %v1200 = vld [vmem:[#allocation19 + $0x70] sm:$0xff]
      %v1201 = vld [vmem:[#allocation19 + $0x78] sm:$0xff]
      %v1202 = vld [vmem:[#allocation19 + $0x80] sm:$0xff]
      %v1203 = vld [vmem:[#allocation19 + $0x88] sm:$0xff]
      %v1204 = vld [vmem:[#allocation19 + $0x90] sm:$0xff]
      %v1205 = vld [vmem:[#allocation19 + $0x98] sm:$0xff]
      %v1206 = vld [vmem:[#allocation19 + $0xa0] sm:$0xff]
      %v1207 = vld [vmem:[#allocation19 + $0xa8] sm:$0xff]
      %v1208 = vld [vmem:[#allocation19 + $0xb0] sm:$0xff]
      %v1209 = vld [vmem:[#allocation19 + $0xb8] sm:$0xff]
      %v1210 = vld [vmem:[#allocation19 + $0xc0] sm:$0xff]
      %v1211 = vld [vmem:[#allocation19 + $0xc8] sm:$0xff]
      %v1212 = vld [vmem:[#allocation19 + $0xd0] sm:$0xff]
      %v1213 = vld [vmem:[#allocation19 + $0xd8] sm:$0xff]
      %v1214 = vld [vmem:[#allocation19 + $0xe0] sm:$0xff]
      %v1215 = vld [vmem:[#allocation19 + $0xe8] sm:$0xff]
      %v1216 = vld [vmem:[#allocation19 + $0xf0] sm:$0xff]
      %v1217 = vld [vmem:[#allocation19 + $0xf8] sm:$0xff]
      %v1218 = vld [vmem:[#allocation19 + $0x100] sm:$0xff]
      %v1219 = vld [vmem:[#allocation19 + $0x108] sm:$0xff]
      %v1220 = vld [vmem:[#allocation19 + $0x110] sm:$0xff]
      %v1221 = vld [vmem:[#allocation19 + $0x118] sm:$0xff]
      %v1222 = vld [vmem:[#allocation19 + $0x120] sm:$0xff]
      %v1223 = vld [vmem:[#allocation19 + $0x128] sm:$0xff]
      %v1224 = vld [vmem:[#allocation19 + $0x130] sm:$0xff]
      %v1225 = vld [vmem:[#allocation19 + $0x138] sm:$0xff]
      %v1226 = vld [vmem:[#allocation19 + $0x140] sm:$0xff]
      %v1227 = vld [vmem:[#allocation19 + $0x148] sm:$0xff]
      %v1228 = vld [vmem:[#allocation19 + $0x150] sm:$0xff]
      %v1229 = vld [vmem:[#allocation19 + $0x158] sm:$0xff]
      %v1230 = vld [vmem:[#allocation19 + $0x160] sm:$0xff]
      %v1231 = vld [vmem:[#allocation19 + $0x168] sm:$0xff]
      %v1232 = vld [vmem:[#allocation19 + $0x170] sm:$0xff]
      %v1233 = vld [vmem:[#allocation19 + $0x178] sm:$0xff]
      %v1234 = vld [vmem:[#allocation19 + $0x180] sm:$0xff]
      %v1235 = vld [vmem:[#allocation19 + $0x188] sm:$0xff]
      %v1236 = vld [vmem:[#allocation19 + $0x190] sm:$0xff]
      %v1237 = vld [vmem:[#allocation19 + $0x198] sm:$0xff]
      %v1238 = vld [vmem:[#allocation19 + $0x1a0] sm:$0xff]
      %v1239 = vld [vmem:[#allocation19 + $0x1a8] sm:$0xff]
      %v1240 = vld [vmem:[#allocation19 + $0x1b0] sm:$0xff]
      %v1241 = vld [vmem:[#allocation19 + $0x1b8] sm:$0xff]
      %v1242 = vld [vmem:[#allocation19 + $0x1c0] sm:$0xff]
      %v1243 = vld [vmem:[#allocation19 + $0x1c8] sm:$0xff]
      %v1244 = vld [vmem:[#allocation19 + $0x1d0] sm:$0xff]
      %v1245 = vld [vmem:[#allocation19 + $0x1d8] sm:$0xff]
      %v1246 = vld [vmem:[#allocation19 + $0x1e0] sm:$0xff]
      %v1247 = vld [vmem:[#allocation19 + $0x1e8] sm:$0xff]
      %v1248 = vld [vmem:[#allocation19 + $0x1f0] sm:$0xff]
      %v1249 = vld [vmem:[#allocation19 + $0x1f8] sm:$0xff]
      %v1250 = vld [vmem:[#allocation19 + $0x200] sm:$0xff]
      %v1251 = vld [vmem:[#allocation19 + $0x208] sm:$0xff]
      %v1252 = vld [vmem:[#allocation19 + $0x210] sm:$0xff]
      %v1253 = vld [vmem:[#allocation19 + $0x218] sm:$0xff]
      %v1254 = vld [vmem:[#allocation19 + $0x220] sm:$0xff]
      %v1255 = vld [vmem:[#allocation19 + $0x228] sm:$0xff]
      %v1256 = vld [vmem:[#allocation19 + $0x230] sm:$0xff]
      %v1257 = vld [vmem:[#allocation19 + $0x238] sm:$0xff]
      %v1258 = vld [vmem:[#allocation19 + $0x240] sm:$0xff]
      %v1259 = vld [vmem:[#allocation19 + $0x248] sm:$0xff]
      %v1260 = vld [vmem:[#allocation19 + $0x250] sm:$0xff]
      %v1261 = vld [vmem:[#allocation19 + $0x258] sm:$0xff]
      %v1262 = vld [vmem:[#allocation19 + $0x260] sm:$0xff]
      %v1263 = vld [vmem:[#allocation19 + $0x268] sm:$0xff]
      %v1264 = vld [vmem:[#allocation19 + $0x270] sm:$0xff]
      %v1265 = vld [vmem:[#allocation19 + $0x278] sm:$0xff]
      %v1266 = vld [vmem:[#allocation19 + $0x280] sm:$0xff]
      %v1267 = vld [vmem:[#allocation19 + $0x288] sm:$0xff]
      %v1268 = vld [vmem:[#allocation19 + $0x290] sm:$0xff]
      %v1269 = vld [vmem:[#allocation19 + $0x298] sm:$0xff]
      %v1270 = vld [vmem:[#allocation19 + $0x2a0] sm:$0xff]
      %v1271 = vld [vmem:[#allocation19 + $0x2a8] sm:$0xff]
      %v1272 = vld [vmem:[#allocation19 + $0x2b0] sm:$0xff]
      %v1273 = vld [vmem:[#allocation19 + $0x2b8] sm:$0xff]
      %v1274 = vld [vmem:[#allocation19 + $0x2c0] sm:$0xff]
      %v1275 = vld [vmem:[#allocation19 + $0x2c8] sm:$0xff]
      %v1276 = vld [vmem:[#allocation19 + $0x2d0] sm:$0xff]
      %v1277 = vld [vmem:[#allocation19 + $0x2d8] sm:$0xff]
      %v1278 = vld [vmem:[#allocation19 + $0x2e0] sm:$0xff]
      %v1279 = vld [vmem:[#allocation19 + $0x2e8] sm:$0xff]
      %v1280 = vld [vmem:[#allocation19 + $0x2f0] sm:$0xff]
      %v1281 = vld [vmem:[#allocation19 + $0x2f8] sm:$0xff]
      %v1282 = vld [vmem:[#allocation19 + $0x300] sm:$0xff]
      %v1283 = vld [vmem:[#allocation19 + $0x308] sm:$0xff]
      %v1284 = vld [vmem:[#allocation19 + $0x310] sm:$0xff]
      %v1285 = vld [vmem:[#allocation19 + $0x318] sm:$0xff]
      %v1286 = vld [vmem:[#allocation19 + $0x320] sm:$0xff]
      %v1287 = vld [vmem:[#allocation19 + $0x328] sm:$0xff]
      %v1288 = vld [vmem:[#allocation19 + $0x330] sm:$0xff]
      %v1289 = vld [vmem:[#allocation19 + $0x338] sm:$0xff]
      %v1290 = vld [vmem:[#allocation19 + $0x340] sm:$0xff]
      %v1291 = vld [vmem:[#allocation19 + $0x348] sm:$0xff]
      %v1292 = vld [vmem:[#allocation19 + $0x350] sm:$0xff]
      %v1293 = vld [vmem:[#allocation19 + $0x358] sm:$0xff]
      %v1294 = vld [vmem:[#allocation19 + $0x360] sm:$0xff]
      %v1295 = vld [vmem:[#allocation19 + $0x368] sm:$0xff]
      %v1296 = vld [vmem:[#allocation19 + $0x370] sm:$0xff]
      %v1297 = vld [vmem:[#allocation19 + $0x378] sm:$0xff]
      %v1298 = vld [vmem:[#allocation19 + $0x380] sm:$0xff]
      %v1299 = vld [vmem:[#allocation19 + $0x388] sm:$0xff]
      %v1300 = vld [vmem:[#allocation19 + $0x390] sm:$0xff]
      %v1301 = vld [vmem:[#allocation19 + $0x398] sm:$0xff]
      %v1302 = vld [vmem:[#allocation19 + $0x3a0] sm:$0xff]
      %v1303 = vld [vmem:[#allocation19 + $0x3a8] sm:$0xff]
      %v1304 = vld [vmem:[#allocation19 + $0x3b0] sm:$0xff]
      %v1305 = vld [vmem:[#allocation19 + $0x3b8] sm:$0xff]
      %v1306 = vld [vmem:[#allocation19 + $0x3c0] sm:$0xff]
      %v1307 = vld [vmem:[#allocation19 + $0x3c8] sm:$0xff]
      %v1308 = vld [vmem:[#allocation19 + $0x3d0] sm:$0xff]
      %v1309 = vld [vmem:[#allocation19 + $0x3d8] sm:$0xff]
      %v1310 = vld [vmem:[#allocation19 + $0x3e0] sm:$0xff]
      %v1311 = vld [vmem:[#allocation19 + $0x3e8] sm:$0xff]
      %v1312 = vld [vmem:[#allocation19 + $0x3f0] sm:$0xff]
      %v1313 = vld [vmem:[#allocation19 + $0x3f8] sm:$0xff]
      %v1314 = vld [vmem:[%s10] sm:$0xf]
      %v1316 = vperm.slane %v1314, 0
      %v1317 = vperm.slane %v1314, 1
      %v1318 = vperm.slane %v1314, 2
      %v1319 = vperm.slane %v1314, 3
      %1324 = vmatpush.msra.mxu0 %v1246
      %1325 = vmatpush.msra.mxu0 %v1242
      %1326 = vmatpush.msra.mxu0 %v1238
      %1327 = vmatpush.msra.mxu0 %v1234
      %1328 = vmatpush.msra.mxu0 %v1230
      %1329 = vmatpush.msra.mxu0 %v1226
      %1330 = vmatpush.msra.mxu0 %v1222
      %1331 = vmatpush.msra.mxu0 %v1218
      %1332 = vmatpush.msra.mxu0 %v1214
      %1333 = vmatpush.msra.mxu0 %v1210
      %1334 = vmatpush.msra.mxu0 %v1206
      %1335 = vmatpush.msra.mxu0 %v1202
      %1336 = vmatpush.msra.mxu0 %v1198
      %1337 = vmatpush.msra.mxu0 %v1194
      %1338 = vmatpush.msra.mxu0 %v1190
      %1339 = vmatpush.msra.mxu0 %v1186
      %1340 = vmatmul.f32.gmra.mxu0 %v1184
      %v1341 = vpop.f32.mrf.mxu0
      %v1342 = vadd.f32 %v1316, %v1341
      %1343 = vdwg.mxu0
      %1344 = vmatpush.msra.mxu0 %v1310
      %1345 = vmatpush.msra.mxu0 %v1306
      %1346 = vmatpush.msra.mxu0 %v1302
      %1347 = vmatpush.msra.mxu0 %v1298
      %1348 = vmatpush.msra.mxu0 %v1294
      %1349 = vmatpush.msra.mxu0 %v1290
      %1350 = vmatpush.msra.mxu0 %v1286
      %1351 = vmatpush.msra.mxu0 %v1282
      %1352 = vmatpush.msra.mxu0 %v1278
      %1353 = vmatpush.msra.mxu0 %v1274
      %1354 = vmatpush.msra.mxu0 %v1270
      %1355 = vmatpush.msra.mxu0 %v1266
      %1356 = vmatpush.msra.mxu0 %v1262
      %1357 = vmatpush.msra.mxu0 %v1258
      %1358 = vmatpush.msra.mxu0 %v1254
      %1359 = vmatpush.msra.mxu0 %v1250
      %1360 = vmatmul.f32.gmra.mxu0 %v1185
      %v1361 = vpop.f32.mrf.mxu0
      %v1362 = vadd.f32 %v1342, %v1361
      %1363 = vdwg.mxu0
      %1364 = vmatpush.msra.mxu0 %v1247
      %1365 = vmatpush.msra.mxu0 %v1243
      %1366 = vmatpush.msra.mxu0 %v1239
      %1367 = vmatpush.msra.mxu0 %v1235
      %1368 = vmatpush.msra.mxu0 %v1231
      %1369 = vmatpush.msra.mxu0 %v1227
      %1370 = vmatpush.msra.mxu0 %v1223
      %1371 = vmatpush.msra.mxu0 %v1219
      %1372 = vmatpush.msra.mxu0 %v1215
      %1373 = vmatpush.msra.mxu0 %v1211
      %1374 = vmatpush.msra.mxu0 %v1207
      %1375 = vmatpush.msra.mxu0 %v1203
      %1376 = vmatpush.msra.mxu0 %v1199
      %1377 = vmatpush.msra.mxu0 %v1195
      %1378 = vmatpush.msra.mxu0 %v1191
      %1379 = vmatpush.msra.mxu0 %v1187
      %1380 = vmatmul.f32.gmra.mxu0 %v1184
      %v1381 = vpop.f32.mrf.mxu0
      %v1382 = vadd.f32 %v1317, %v1381
      %1383 = vdwg.mxu0
      %1384 = vmatpush.msra.mxu0 %v1311
      %1385 = vmatpush.msra.mxu0 %v1307
      %1386 = vmatpush.msra.mxu0 %v1303
      %1387 = vmatpush.msra.mxu0 %v1299
      %1388 = vmatpush.msra.mxu0 %v1295
      %1389 = vmatpush.msra.mxu0 %v1291
      %1390 = vmatpush.msra.mxu0 %v1287
      %1391 = vmatpush.msra.mxu0 %v1283
      %1392 = vmatpush.msra.mxu0 %v1279
      %1393 = vmatpush.msra.mxu0 %v1275
      %1394 = vmatpush.msra.mxu0 %v1271
      %1395 = vmatpush.msra.mxu0 %v1267
      %1396 = vmatpush.msra.mxu0 %v1263
      %1397 = vmatpush.msra.mxu0 %v1259
      %1398 = vmatpush.msra.mxu0 %v1255
      %1399 = vmatpush.msra.mxu0 %v1251
      %1400 = vmatmul.f32.gmra.mxu0 %v1185
      %v1401 = vpop.f32.mrf.mxu0
      %v1402 = vadd.f32 %v1382, %v1401
      %1403 = vdwg.mxu0
      %1404 = vmatpush.msra.mxu0 %v1248
      %1405 = vmatpush.msra.mxu0 %v1244
      %1406 = vmatpush.msra.mxu0 %v1240
      %1407 = vmatpush.msra.mxu0 %v1236
      %1408 = vmatpush.msra.mxu0 %v1232
      %1409 = vmatpush.msra.mxu0 %v1228
      %1410 = vmatpush.msra.mxu0 %v1224
      %1411 = vmatpush.msra.mxu0 %v1220
      %1412 = vmatpush.msra.mxu0 %v1216
      %1413 = vmatpush.msra.mxu0 %v1212
      %1414 = vmatpush.msra.mxu0 %v1208
      %1415 = vmatpush.msra.mxu0 %v1204
      %1416 = vmatpush.msra.mxu0 %v1200
      %1417 = vmatpush.msra.mxu0 %v1196
      %1418 = vmatpush.msra.mxu0 %v1192
      %1419 = vmatpush.msra.mxu0 %v1188
      %1420 = vmatmul.f32.gmra.mxu0 %v1184
      %v1421 = vpop.f32.mrf.mxu0
      %v1422 = vadd.f32 %v1318, %v1421
      %1423 = vdwg.mxu0
      %1424 = vmatpush.msra.mxu0 %v1312
      %1425 = vmatpush.msra.mxu0 %v1308
      %1426 = vmatpush.msra.mxu0 %v1304
      %1427 = vmatpush.msra.mxu0 %v1300
      %1428 = vmatpush.msra.mxu0 %v1296
      %1429 = vmatpush.msra.mxu0 %v1292
      %1430 = vmatpush.msra.mxu0 %v1288
      %1431 = vmatpush.msra.mxu0 %v1284
      %1432 = vmatpush.msra.mxu0 %v1280
      %1433 = vmatpush.msra.mxu0 %v1276
      %1434 = vmatpush.msra.mxu0 %v1272
      %1435 = vmatpush.msra.mxu0 %v1268
      %1436 = vmatpush.msra.mxu0 %v1264
      %1437 = vmatpush.msra.mxu0 %v1260
      %1438 = vmatpush.msra.mxu0 %v1256
      %1439 = vmatpush.msra.mxu0 %v1252
      %1440 = vmatmul.f32.gmra.mxu0 %v1185
      %v1441 = vpop.f32.mrf.mxu0
      %v1442 = vadd.f32 %v1422, %v1441
      %1443 = vdwg.mxu0
      %1444 = vmatpush.msra.mxu0 %v1249
      %1445 = vmatpush.msra.mxu0 %v1245
      %1446 = vmatpush.msra.mxu0 %v1241
      %1447 = vmatpush.msra.mxu0 %v1237
      %1448 = vmatpush.msra.mxu0 %v1233
      %1449 = vmatpush.msra.mxu0 %v1229
      %1450 = vmatpush.msra.mxu0 %v1225
      %1451 = vmatpush.msra.mxu0 %v1221
      %1452 = vmatpush.msra.mxu0 %v1217
      %1453 = vmatpush.msra.mxu0 %v1213
      %1454 = vmatpush.msra.mxu0 %v1209
      %1455 = vmatpush.msra.mxu0 %v1205
      %1456 = vmatpush.msra.mxu0 %v1201
      %1457 = vmatpush.msra.mxu0 %v1197
      %1458 = vmatpush.msra.mxu0 %v1193
      %1459 = vmatpush.msra.mxu0 %v1189
      %1460 = vmatmul.f32.gmra.mxu0 %v1184
      %v1461 = vpop.f32.mrf.mxu0
      %v1462 = vadd.f32 %v1319, %v1461
      %1463 = vdwg.mxu0
      %1464 = vmatpush.msra.mxu0 %v1313
      %1465 = vmatpush.msra.mxu0 %v1309
      %1466 = vmatpush.msra.mxu0 %v1305
      %1467 = vmatpush.msra.mxu0 %v1301
      %1468 = vmatpush.msra.mxu0 %v1297
      %1469 = vmatpush.msra.mxu0 %v1293
      %1470 = vmatpush.msra.mxu0 %v1289
      %1471 = vmatpush.msra.mxu0 %v1285
      %1472 = vmatpush.msra.mxu0 %v1281
      %1473 = vmatpush.msra.mxu0 %v1277
      %1474 = vmatpush.msra.mxu0 %v1273
      %1475 = vmatpush.msra.mxu0 %v1269
      %1476 = vmatpush.msra.mxu0 %v1265
      %1477 = vmatpush.msra.mxu0 %v1261
      %1478 = vmatpush.msra.mxu0 %v1257
      %1479 = vmatpush.msra.mxu0 %v1253
      %1480 = vmatmul.f32.gmra.mxu0 %v1185
      %v1481 = vpop.f32.mrf.mxu0
      %v1482 = vadd.f32 %v1462, %v1481
      %1483 = vdwg.mxu0
      %v1484 = vmax.f32 %v1362, 0.0
      %v1485 = vmax.f32 %v1402, 0.0
      %v1486 = vmax.f32 %v1442, 0.0
      %v1487 = vmax.f32 %v1482, 0.0
      %v1488 = vld [vmem:[#allocation20] sm:$0xff]
      %v1489 = vld [vmem:[#allocation20 + $0x8] sm:$0xff]
      %v1490 = vld [vmem:[#allocation20 + $0x10] sm:$0xff]
      %v1491 = vld [vmem:[#allocation20 + $0x18] sm:$0xff]
      %v1492 = vld [vmem:[#allocation20 + $0x20] sm:$0xff]
      %v1493 = vld [vmem:[#allocation20 + $0x28] sm:$0xff]
      %v1494 = vld [vmem:[#allocation20 + $0x30] sm:$0xff]
      %v1495 = vld [vmem:[#allocation20 + $0x38] sm:$0xff]
      %v1496 = vld [vmem:[#allocation20 + $0x40] sm:$0xff]
      %v1497 = vld [vmem:[#allocation20 + $0x48] sm:$0xff]
      %v1498 = vld [vmem:[#allocation20 + $0x50] sm:$0xff]
      %v1499 = vld [vmem:[#allocation20 + $0x58] sm:$0xff]
      %v1500 = vld [vmem:[#allocation20 + $0x60] sm:$0xff]
      %v1501 = vld [vmem:[#allocation20 + $0x68] sm:$0xff]
      %v1502 = vld [vmem:[#allocation20 + $0x70] sm:$0xff]
      %v1503 = vld [vmem:[#allocation20 + $0x78] sm:$0xff]
      %v1504 = vld [vmem:[#allocation20 + $0x80] sm:$0xff]
      %v1505 = vld [vmem:[#allocation20 + $0x88] sm:$0xff]
      %v1506 = vld [vmem:[#allocation20 + $0x90] sm:$0xff]
      %v1507 = vld [vmem:[#allocation20 + $0x98] sm:$0xff]
      %v1508 = vld [vmem:[#allocation20 + $0xa0] sm:$0xff]
      %v1509 = vld [vmem:[#allocation20 + $0xa8] sm:$0xff]
      %v1510 = vld [vmem:[#allocation20 + $0xb0] sm:$0xff]
      %v1511 = vld [vmem:[#allocation20 + $0xb8] sm:$0xff]
      %v1512 = vld [vmem:[#allocation20 + $0xc0] sm:$0xff]
      %v1513 = vld [vmem:[#allocation20 + $0xc8] sm:$0xff]
      %v1514 = vld [vmem:[#allocation20 + $0xd0] sm:$0xff]
      %v1515 = vld [vmem:[#allocation20 + $0xd8] sm:$0xff]
      %v1516 = vld [vmem:[#allocation20 + $0xe0] sm:$0xff]
      %v1517 = vld [vmem:[#allocation20 + $0xe8] sm:$0xff]
      %v1518 = vld [vmem:[#allocation20 + $0xf0] sm:$0xff]
      %v1519 = vld [vmem:[#allocation20 + $0xf8] sm:$0xff]
      %v1520 = vld [vmem:[#allocation20 + $0x100] sm:$0xff]
      %v1521 = vld [vmem:[#allocation20 + $0x108] sm:$0xff]
      %v1522 = vld [vmem:[#allocation20 + $0x110] sm:$0xff]
      %v1523 = vld [vmem:[#allocation20 + $0x118] sm:$0xff]
      %v1524 = vld [vmem:[#allocation20 + $0x120] sm:$0xff]
      %v1525 = vld [vmem:[#allocation20 + $0x128] sm:$0xff]
      %v1526 = vld [vmem:[#allocation20 + $0x130] sm:$0xff]
      %v1527 = vld [vmem:[#allocation20 + $0x138] sm:$0xff]
      %v1528 = vld [vmem:[#allocation20 + $0x140] sm:$0xff]
      %v1529 = vld [vmem:[#allocation20 + $0x148] sm:$0xff]
      %v1530 = vld [vmem:[#allocation20 + $0x150] sm:$0xff]
      %v1531 = vld [vmem:[#allocation20 + $0x158] sm:$0xff]
      %v1532 = vld [vmem:[#allocation20 + $0x160] sm:$0xff]
      %v1533 = vld [vmem:[#allocation20 + $0x168] sm:$0xff]
      %v1534 = vld [vmem:[#allocation20 + $0x170] sm:$0xff]
      %v1535 = vld [vmem:[#allocation20 + $0x178] sm:$0xff]
      %v1536 = vld [vmem:[#allocation20 + $0x180] sm:$0xff]
      %v1537 = vld [vmem:[#allocation20 + $0x188] sm:$0xff]
      %v1538 = vld [vmem:[#allocation20 + $0x190] sm:$0xff]
      %v1539 = vld [vmem:[#allocation20 + $0x198] sm:$0xff]
      %v1540 = vld [vmem:[#allocation20 + $0x1a0] sm:$0xff]
      %v1541 = vld [vmem:[#allocation20 + $0x1a8] sm:$0xff]
      %v1542 = vld [vmem:[#allocation20 + $0x1b0] sm:$0xff]
      %v1543 = vld [vmem:[#allocation20 + $0x1b8] sm:$0xff]
      %v1544 = vld [vmem:[#allocation20 + $0x1c0] sm:$0xff]
      %v1545 = vld [vmem:[#allocation20 + $0x1c8] sm:$0xff]
      %v1546 = vld [vmem:[#allocation20 + $0x1d0] sm:$0xff]
      %v1547 = vld [vmem:[#allocation20 + $0x1d8] sm:$0xff]
      %v1548 = vld [vmem:[#allocation20 + $0x1e0] sm:$0xff]
      %v1549 = vld [vmem:[#allocation20 + $0x1e8] sm:$0xff]
      %v1550 = vld [vmem:[#allocation20 + $0x1f0] sm:$0xff]
      %v1551 = vld [vmem:[#allocation20 + $0x1f8] sm:$0xff]
      %v1552 = vld [vmem:[#allocation20 + $0x200] sm:$0xff]
      %v1553 = vld [vmem:[#allocation20 + $0x208] sm:$0xff]
      %v1554 = vld [vmem:[#allocation20 + $0x210] sm:$0xff]
      %v1555 = vld [vmem:[#allocation20 + $0x218] sm:$0xff]
      %v1556 = vld [vmem:[#allocation20 + $0x220] sm:$0xff]
      %v1557 = vld [vmem:[#allocation20 + $0x228] sm:$0xff]
      %v1558 = vld [vmem:[#allocation20 + $0x230] sm:$0xff]
      %v1559 = vld [vmem:[#allocation20 + $0x238] sm:$0xff]
      %v1560 = vld [vmem:[#allocation20 + $0x240] sm:$0xff]
      %v1561 = vld [vmem:[#allocation20 + $0x248] sm:$0xff]
      %v1562 = vld [vmem:[#allocation20 + $0x250] sm:$0xff]
      %v1563 = vld [vmem:[#allocation20 + $0x258] sm:$0xff]
      %v1564 = vld [vmem:[#allocation20 + $0x260] sm:$0xff]
      %v1565 = vld [vmem:[#allocation20 + $0x268] sm:$0xff]
      %v1566 = vld [vmem:[#allocation20 + $0x270] sm:$0xff]
      %v1567 = vld [vmem:[#allocation20 + $0x278] sm:$0xff]
      %v1568 = vld [vmem:[#allocation20 + $0x280] sm:$0xff]
      %v1569 = vld [vmem:[#allocation20 + $0x288] sm:$0xff]
      %v1570 = vld [vmem:[#allocation20 + $0x290] sm:$0xff]
      %v1571 = vld [vmem:[#allocation20 + $0x298] sm:$0xff]
      %v1572 = vld [vmem:[#allocation20 + $0x2a0] sm:$0xff]
      %v1573 = vld [vmem:[#allocation20 + $0x2a8] sm:$0xff]
      %v1574 = vld [vmem:[#allocation20 + $0x2b0] sm:$0xff]
      %v1575 = vld [vmem:[#allocation20 + $0x2b8] sm:$0xff]
      %v1576 = vld [vmem:[#allocation20 + $0x2c0] sm:$0xff]
      %v1577 = vld [vmem:[#allocation20 + $0x2c8] sm:$0xff]
      %v1578 = vld [vmem:[#allocation20 + $0x2d0] sm:$0xff]
      %v1579 = vld [vmem:[#allocation20 + $0x2d8] sm:$0xff]
      %v1580 = vld [vmem:[#allocation20 + $0x2e0] sm:$0xff]
      %v1581 = vld [vmem:[#allocation20 + $0x2e8] sm:$0xff]
      %v1582 = vld [vmem:[#allocation20 + $0x2f0] sm:$0xff]
      %v1583 = vld [vmem:[#allocation20 + $0x2f8] sm:$0xff]
      %v1584 = vld [vmem:[#allocation20 + $0x300] sm:$0xff]
      %v1585 = vld [vmem:[#allocation20 + $0x308] sm:$0xff]
      %v1586 = vld [vmem:[#allocation20 + $0x310] sm:$0xff]
      %v1587 = vld [vmem:[#allocation20 + $0x318] sm:$0xff]
      %v1588 = vld [vmem:[#allocation20 + $0x320] sm:$0xff]
      %v1589 = vld [vmem:[#allocation20 + $0x328] sm:$0xff]
      %v1590 = vld [vmem:[#allocation20 + $0x330] sm:$0xff]
      %v1591 = vld [vmem:[#allocation20 + $0x338] sm:$0xff]
      %v1592 = vld [vmem:[#allocation20 + $0x340] sm:$0xff]
      %v1593 = vld [vmem:[#allocation20 + $0x348] sm:$0xff]
      %v1594 = vld [vmem:[#allocation20 + $0x350] sm:$0xff]
      %v1595 = vld [vmem:[#allocation20 + $0x358] sm:$0xff]
      %v1596 = vld [vmem:[#allocation20 + $0x360] sm:$0xff]
      %v1597 = vld [vmem:[#allocation20 + $0x368] sm:$0xff]
      %v1598 = vld [vmem:[#allocation20 + $0x370] sm:$0xff]
      %v1599 = vld [vmem:[#allocation20 + $0x378] sm:$0xff]
      %v1600 = vld [vmem:[#allocation20 + $0x380] sm:$0xff]
      %v1601 = vld [vmem:[#allocation20 + $0x388] sm:$0xff]
      %v1602 = vld [vmem:[#allocation20 + $0x390] sm:$0xff]
      %v1603 = vld [vmem:[#allocation20 + $0x398] sm:$0xff]
      %v1604 = vld [vmem:[#allocation20 + $0x3a0] sm:$0xff]
      %v1605 = vld [vmem:[#allocation20 + $0x3a8] sm:$0xff]
      %v1606 = vld [vmem:[#allocation20 + $0x3b0] sm:$0xff]
      %v1607 = vld [vmem:[#allocation20 + $0x3b8] sm:$0xff]
      %v1608 = vld [vmem:[#allocation20 + $0x3c0] sm:$0xff]
      %v1609 = vld [vmem:[#allocation20 + $0x3c8] sm:$0xff]
      %v1610 = vld [vmem:[#allocation20 + $0x3d0] sm:$0xff]
      %v1611 = vld [vmem:[#allocation20 + $0x3d8] sm:$0xff]
      %v1612 = vld [vmem:[#allocation20 + $0x3e0] sm:$0xff]
      %v1613 = vld [vmem:[#allocation20 + $0x3e8] sm:$0xff]
      %v1614 = vld [vmem:[#allocation20 + $0x3f0] sm:$0xff]
      %v1615 = vld [vmem:[#allocation20 + $0x3f8] sm:$0xff]
      %v1616 = vld [vmem:[%s12] sm:$0x3]
      %v1618 = vperm.slane %v1616, 0
      %v1619 = vperm.slane %v1616, 1
      %1622 = vmatpush.msra.mxu0 %v1518
      %1623 = vmatpush.msra.mxu0 %v1516
      %1624 = vmatpush.msra.mxu0 %v1514
      %1625 = vmatpush.msra.mxu0 %v1512
      %1626 = vmatpush.msra.mxu0 %v1510
      %1627 = vmatpush.msra.mxu0 %v1508
      %1628 = vmatpush.msra.mxu0 %v1506
      %1629 = vmatpush.msra.mxu0 %v1504
      %1630 = vmatpush.msra.mxu0 %v1502
      %1631 = vmatpush.msra.mxu0 %v1500
      %1632 = vmatpush.msra.mxu0 %v1498
      %1633 = vmatpush.msra.mxu0 %v1496
      %1634 = vmatpush.msra.mxu0 %v1494
      %1635 = vmatpush.msra.mxu0 %v1492
      %1636 = vmatpush.msra.mxu0 %v1490
      %1637 = vmatpush.msra.mxu0 %v1488
      %1638 = vmatmul.f32.gmra.mxu0 %v1484
      %v1639 = vpop.f32.mrf.mxu0
      %v1640 = vadd.f32 %v1618, %v1639
      %1641 = vdwg.mxu0
      %1642 = vmatpush.msra.mxu0 %v1550
      %1643 = vmatpush.msra.mxu0 %v1548
      %1644 = vmatpush.msra.mxu0 %v1546
      %1645 = vmatpush.msra.mxu0 %v1544
      %1646 = vmatpush.msra.mxu0 %v1542
      %1647 = vmatpush.msra.mxu0 %v1540
      %1648 = vmatpush.msra.mxu0 %v1538
      %1649 = vmatpush.msra.mxu0 %v1536
      %1650 = vmatpush.msra.mxu0 %v1534
      %1651 = vmatpush.msra.mxu0 %v1532
      %1652 = vmatpush.msra.mxu0 %v1530
      %1653 = vmatpush.msra.mxu0 %v1528
      %1654 = vmatpush.msra.mxu0 %v1526
      %1655 = vmatpush.msra.mxu0 %v1524
      %1656 = vmatpush.msra.mxu0 %v1522
      %1657 = vmatpush.msra.mxu0 %v1520
      %1658 = vmatmul.f32.gmra.mxu0 %v1485
      %v1659 = vpop.f32.mrf.mxu0
      %v1660 = vadd.f32 %v1640, %v1659
      %1661 = vdwg.mxu0
      %1662 = vmatpush.msra.mxu0 %v1582
      %1663 = vmatpush.msra.mxu0 %v1580
      %1664 = vmatpush.msra.mxu0 %v1578
      %1665 = vmatpush.msra.mxu0 %v1576
      %1666 = vmatpush.msra.mxu0 %v1574
      %1667 = vmatpush.msra.mxu0 %v1572
      %1668 = vmatpush.msra.mxu0 %v1570
      %1669 = vmatpush.msra.mxu0 %v1568
      %1670 = vmatpush.msra.mxu0 %v1566
      %1671 = vmatpush.msra.mxu0 %v1564
      %1672 = vmatpush.msra.mxu0 %v1562
      %1673 = vmatpush.msra.mxu0 %v1560
      %1674 = vmatpush.msra.mxu0 %v1558
      %1675 = vmatpush.msra.mxu0 %v1556
      %1676 = vmatpush.msra.mxu0 %v1554
      %1677 = vmatpush.msra.mxu0 %v1552
      %1678 = vmatmul.f32.gmra.mxu0 %v1486
      %v1679 = vpop.f32.mrf.mxu0
      %v1680 = vadd.f32 %v1660, %v1679
      %1681 = vdwg.mxu0
      %1682 = vmatpush.msra.mxu0 %v1614
      %1683 = vmatpush.msra.mxu0 %v1612
      %1684 = vmatpush.msra.mxu0 %v1610
      %1685 = vmatpush.msra.mxu0 %v1608
      %1686 = vmatpush.msra.mxu0 %v1606
      %1687 = vmatpush.msra.mxu0 %v1604
      %1688 = vmatpush.msra.mxu0 %v1602
      %1689 = vmatpush.msra.mxu0 %v1600
      %1690 = vmatpush.msra.mxu0 %v1598
      %1691 = vmatpush.msra.mxu0 %v1596
      %1692 = vmatpush.msra.mxu0 %v1594
      %1693 = vmatpush.msra.mxu0 %v1592
      %1694 = vmatpush.msra.mxu0 %v1590
      %1695 = vmatpush.msra.mxu0 %v1588
      %1696 = vmatpush.msra.mxu0 %v1586
      %1697 = vmatpush.msra.mxu0 %v1584
      %1698 = vmatmul.f32.gmra.mxu0 %v1487
      %v1699 = vpop.f32.mrf.mxu0
      %v1700 = vadd.f32 %v1680, %v1699
      %1701 = vdwg.mxu0
      %1702 = vmatpush.msra.mxu0 %v1519
      %1703 = vmatpush.msra.mxu0 %v1517
      %1704 = vmatpush.msra.mxu0 %v1515
      %1705 = vmatpush.msra.mxu0 %v1513
      %1706 = vmatpush.msra.mxu0 %v1511
      %1707 = vmatpush.msra.mxu0 %v1509
      %1708 = vmatpush.msra.mxu0 %v1507
      %1709 = vmatpush.msra.mxu0 %v1505
      %1710 = vmatpush.msra.mxu0 %v1503
      %1711 = vmatpush.msra.mxu0 %v1501
      %1712 = vmatpush.msra.mxu0 %v1499
      %1713 = vmatpush.msra.mxu0 %v1497
      %1714 = vmatpush.msra.mxu0 %v1495
      %1715 = vmatpush.msra.mxu0 %v1493
      %1716 = vmatpush.msra.mxu0 %v1491
      %1717 = vmatpush.msra.mxu0 %v1489
      %1718 = vmatmul.f32.gmra.mxu0 %v1484
      %v1719 = vpop.f32.mrf.mxu0
      %v1720 = vadd.f32 %v1619, %v1719
      %1721 = vdwg.mxu0
      %1722 = vmatpush.msra.mxu0 %v1551
      %1723 = vmatpush.msra.mxu0 %v1549
      %1724 = vmatpush.msra.mxu0 %v1547
      %1725 = vmatpush.msra.mxu0 %v1545
      %1726 = vmatpush.msra.mxu0 %v1543
      %1727 = vmatpush.msra.mxu0 %v1541
      %1728 = vmatpush.msra.mxu0 %v1539
      %1729 = vmatpush.msra.mxu0 %v1537
      %1730 = vmatpush.msra.mxu0 %v1535
      %1731 = vmatpush.msra.mxu0 %v1533
      %1732 = vmatpush.msra.mxu0 %v1531
      %1733 = vmatpush.msra.mxu0 %v1529
      %1734 = vmatpush.msra.mxu0 %v1527
      %1735 = vmatpush.msra.mxu0 %v1525
      %1736 = vmatpush.msra.mxu0 %v1523
      %1737 = vmatpush.msra.mxu0 %v1521
      %1738 = vmatmul.f32.gmra.mxu0 %v1485
      %v1739 = vpop.f32.mrf.mxu0
      %v1740 = vadd.f32 %v1720, %v1739
      %1741 = vdwg.mxu0
      %1742 = vmatpush.msra.mxu0 %v1583
      %1743 = vmatpush.msra.mxu0 %v1581
      %1744 = vmatpush.msra.mxu0 %v1579
      %1745 = vmatpush.msra.mxu0 %v1577
      %1746 = vmatpush.msra.mxu0 %v1575
      %1747 = vmatpush.msra.mxu0 %v1573
      %1748 = vmatpush.msra.mxu0 %v1571
      %1749 = vmatpush.msra.mxu0 %v1569
      %1750 = vmatpush.msra.mxu0 %v1567
      %1751 = vmatpush.msra.mxu0 %v1565
      %1752 = vmatpush.msra.mxu0 %v1563
      %1753 = vmatpush.msra.mxu0 %v1561
      %1754 = vmatpush.msra.mxu0 %v1559
      %1755 = vmatpush.msra.mxu0 %v1557
      %1756 = vmatpush.msra.mxu0 %v1555
      %1757 = vmatpush.msra.mxu0 %v1553
      %1758 = vmatmul.f32.gmra.mxu0 %v1486
      %v1759 = vpop.f32.mrf.mxu0
      %v1760 = vadd.f32 %v1740, %v1759
      %1761 = vdwg.mxu0
      %1762 = vmatpush.msra.mxu0 %v1615
      %1763 = vmatpush.msra.mxu0 %v1613
      %1764 = vmatpush.msra.mxu0 %v1611
      %1765 = vmatpush.msra.mxu0 %v1609
      %1766 = vmatpush.msra.mxu0 %v1607
      %1767 = vmatpush.msra.mxu0 %v1605
      %1768 = vmatpush.msra.mxu0 %v1603
      %1769 = vmatpush.msra.mxu0 %v1601
      %1770 = vmatpush.msra.mxu0 %v1599
      %1771 = vmatpush.msra.mxu0 %v1597
      %1772 = vmatpush.msra.mxu0 %v1595
      %1773 = vmatpush.msra.mxu0 %v1593
      %1774 = vmatpush.msra.mxu0 %v1591
      %1775 = vmatpush.msra.mxu0 %v1589
      %1776 = vmatpush.msra.mxu0 %v1587
      %1777 = vmatpush.msra.mxu0 %v1585
      %1778 = vmatmul.f32.gmra.mxu0 %v1487
      %v1779 = vpop.f32.mrf.mxu0
      %v1780 = vadd.f32 %v1760, %v1779
      %1781 = vdwg.mxu0
      %v1782 = vmax.f32 %v1700, 0.0
      %v1783 = vmax.f32 %v1780, 0.0
      %v1784 = vld [vmem:[#allocation22] sm:$0xff]
      %v1785 = vld [vmem:[#allocation22 + $0x8] sm:$0xff]
      %v1786 = vld [vmem:[#allocation22 + $0x10] sm:$0xff]
      %v1787 = vld [vmem:[#allocation22 + $0x18] sm:$0xff]
      %v1788 = vld [vmem:[#allocation22 + $0x20] sm:$0xff]
      %v1789 = vld [vmem:[#allocation22 + $0x28] sm:$0xff]
      %v1790 = vld [vmem:[#allocation22 + $0x30] sm:$0xff]
      %v1791 = vld [vmem:[#allocation22 + $0x38] sm:$0xff]
      %v1792 = vld [vmem:[#allocation22 + $0x40] sm:$0xff]
      %v1793 = vld [vmem:[#allocation22 + $0x48] sm:$0xff]
      %v1794 = vld [vmem:[#allocation22 + $0x50] sm:$0xff]
      %v1795 = vld [vmem:[#allocation22 + $0x58] sm:$0xff]
      %v1796 = vld [vmem:[#allocation22 + $0x60] sm:$0xff]
      %v1797 = vld [vmem:[#allocation22 + $0x68] sm:$0xff]
      %v1798 = vld [vmem:[#allocation22 + $0x70] sm:$0xff]
      %v1799 = vld [vmem:[#allocation22 + $0x78] sm:$0xff]
      %v1800 = vld [vmem:[#allocation22 + $0x80] sm:$0xff]
      %v1801 = vld [vmem:[#allocation22 + $0x88] sm:$0xff]
      %v1802 = vld [vmem:[#allocation22 + $0x90] sm:$0xff]
      %v1803 = vld [vmem:[#allocation22 + $0x98] sm:$0xff]
      %v1804 = vld [vmem:[#allocation22 + $0xa0] sm:$0xff]
      %v1805 = vld [vmem:[#allocation22 + $0xa8] sm:$0xff]
      %v1806 = vld [vmem:[#allocation22 + $0xb0] sm:$0xff]
      %v1807 = vld [vmem:[#allocation22 + $0xb8] sm:$0xff]
      %v1808 = vld [vmem:[#allocation22 + $0xc0] sm:$0xff]
      %v1809 = vld [vmem:[#allocation22 + $0xc8] sm:$0xff]
      %v1810 = vld [vmem:[#allocation22 + $0xd0] sm:$0xff]
      %v1811 = vld [vmem:[#allocation22 + $0xd8] sm:$0xff]
      %v1812 = vld [vmem:[#allocation22 + $0xe0] sm:$0xff]
      %v1813 = vld [vmem:[#allocation22 + $0xe8] sm:$0xff]
      %v1814 = vld [vmem:[#allocation22 + $0xf0] sm:$0xff]
      %v1815 = vld [vmem:[#allocation22 + $0xf8] sm:$0xff]
      %v1816 = vld [vmem:[%s14] sm:$0x1]
      %v1818 = vperm.slane %v1816, 0
      %1820 = vmatpush.msra.mxu0 %v1799
      %1821 = vmatpush.msra.mxu0 %v1798
      %1822 = vmatpush.msra.mxu0 %v1797
      %1823 = vmatpush.msra.mxu0 %v1796
      %1824 = vmatpush.msra.mxu0 %v1795
      %1825 = vmatpush.msra.mxu0 %v1794
      %1826 = vmatpush.msra.mxu0 %v1793
      %1827 = vmatpush.msra.mxu0 %v1792
      %1828 = vmatpush.msra.mxu0 %v1791
      %1829 = vmatpush.msra.mxu0 %v1790
      %1830 = vmatpush.msra.mxu0 %v1789
      %1831 = vmatpush.msra.mxu0 %v1788
      %1832 = vmatpush.msra.mxu0 %v1787
      %1833 = vmatpush.msra.mxu0 %v1786
      %1834 = vmatpush.msra.mxu0 %v1785
      %1835 = vmatpush.msra.mxu0 %v1784
      %1836 = vmatmul.f32.gmra.mxu0 %v1782
      %v1837 = vpop.f32.mrf.mxu0
      %v1838 = vadd.f32 %v1818, %v1837
      %1839 = vdwg.mxu0
      %1840 = vmatpush.msra.mxu0 %v1815
      %1841 = vmatpush.msra.mxu0 %v1814
      %1842 = vmatpush.msra.mxu0 %v1813
      %1843 = vmatpush.msra.mxu0 %v1812
      %1844 = vmatpush.msra.mxu0 %v1811
      %1845 = vmatpush.msra.mxu0 %v1810
      %1846 = vmatpush.msra.mxu0 %v1809
      %1847 = vmatpush.msra.mxu0 %v1808
      %1848 = vmatpush.msra.mxu0 %v1807
      %1849 = vmatpush.msra.mxu0 %v1806
      %1850 = vmatpush.msra.mxu0 %v1805
      %1851 = vmatpush.msra.mxu0 %v1804
      %1852 = vmatpush.msra.mxu0 %v1803
      %1853 = vmatpush.msra.mxu0 %v1802
      %1854 = vmatpush.msra.mxu0 %v1801
      %1855 = vmatpush.msra.mxu0 %v1800
      %1856 = vmatmul.f32.gmra.mxu0 %v1783
      %v1857 = vpop.f32.mrf.mxu0
      %v1858 = vadd.f32 %v1838, %v1857
      %1859 = vdwg.mxu0
      %1860 = vst [vmem:[#allocation23] sm:$0xff] %v1858
    $region112: #{tpu_custom_call.1} parent=1 // pred_fallthru
      _
    // Predicated region
    $region113: #{tpu_custom_call.1} parent=1 // pred_check
      _
    $region114: #{tpu_custom_call.1} parent=1 // pred_check_branch
      %1862 = sbr.rel (0) target = $region116
    $region115: #{tpu_custom_call.1} parent=1 // pred_region
      %1864 = vsyncadd [#allocation10], 0
      %s1866 = sshll.u32 [#allocation23], 4
      %s1867 = int_to_ptr.vmem [resolvable:$true] %s1866
      %s1868 = sshll.u32 %s15, 4
      %s1869 = int_to_ptr.hbm [resolvable:$true] %s1868
      %1871 = dma.vmem_to_hbm [thread:$0]  %s1867, 128, %s1869, [#allocation10]
    $region116: #{tpu_custom_call.1} parent=1 // pred_fallthru
      _
    // Predicated region
    $region117: #{tpu_custom_call.1} parent=1 // pred_check
      _
    $region118: #{tpu_custom_call.1} parent=1 // pred_check_branch
      %1873 = sbr.rel (0) target = $region120
    $region119: #{tpu_custom_call.1} parent=1 // pred_region
      %1875 = dma.done [#allocation10], 128
    $region120: #{tpu_custom_call.1} parent=1 // pred_fallthru
      _
    %1876 = vsyncpa [#allocation9], 1
    %1877 = vsyncpa [#allocation12], 1
    %1878 = vsyncpa [#allocation15], 1
    %1879 = vsyncpa [#allocation18], 1
    %1880 = vsyncpa [#allocation21], 1
    %1881 = vsyncpa [#allocation10], 1

</llo_original>
